<compile_context>
chip_gen: v6e
topology: v6e:2x2x1
jax: 0.10.0
libtpu: 0.0.40
codegen_flags: <defaults>
</compile_context>

<pallas_src>
import functools
import math

import jax
import jax.numpy as jnp
from jax.experimental import pallas as pl
from jax.experimental.pallas import tpu as pltpu

# Finite additive key-padding sentinel (safer than -inf; note: a fully padded
# key row yields uniform attention here instead of PyTorch's NaN).
MASK_VALUE = -1e9


def _round_up(x, m):
    return ((x + m - 1) // m) * m


# ----------------------------------------------------------------------------
# Pallas kernel: one encoder layer applied to one batch tile.
# Grid = (batch_tiles, num_layers); the activation lives in out_ref (VMEM)
# across the whole layer axis (accumulator pattern: constant out block index
# along the layer axis).
# ----------------------------------------------------------------------------
def _encoder_stack_kernel(x_ref, mask_ref,
                          w_in_ref, w_o_ref, w1_ref, w2_ref, vec_ref,
                          out_ref, *, heads, head_dim, eps):
    layer = pl.program_id(1)

    # Initialise the resident activation from the input on the first layer.
    @pl.when(layer == 0)
    def _():
        out_ref[...] = x_ref[...]

    B, S, E = out_ref.shape
    H, Dh = heads, head_dim
    F = w1_ref.shape[-1]
    M = B * S

    # ---- packed per-layer vectors: one DMA, sliced here (offsets are static)
    vec = vec_ref[...]                       # (8, W) f32
    b_in = vec[0:1, :3 * E]                  # qkv bias (q part pre-scaled)
    b1 = vec[1:2, :F]
    b_o = vec[2:3, :E]
    ln1_w, ln1_b = vec[3:4, :E], vec[4:5, :E]
    b2 = vec[5:6, :E]
    ln2_w, ln2_b = vec[6:7, :E], vec[7:8, :E]

    x = out_ref[...]                         # (B, S, E) f32, resident state
    xf = x.reshape(M, E)                     # flatten rows -> bigger MXU M
    x_bf = xf.astype(jnp.bfloat16)

    # ---- fused QKV projection (bf16 MXU, f32 accumulation) ------------------
    # 1/sqrt(head_dim) is already folded into the query weights / bias.
    qkv = jnp.dot(x_bf, w_in_ref[...],
                  preferred_element_type=jnp.float32) + b_in
    q = qkv[:, 0 * E:1 * E].reshape(B, S, E).astype(jnp.bfloat16)
    k = qkv[:, 1 * E:2 * E].reshape(B, S, E).astype(jnp.bfloat16)
    v = qkv[:, 2 * E:3 * E].reshape(B, S, E).astype(jnp.bfloat16)

    # ---- multi-head attention, heads folded into the leading batch dim ------
    # One batched einsum pair + one softmax + one mask add for ALL heads
    # (only single-batch-dim einsums are used so Mosaic lowers them directly).
    # TODO(synk): pad E / head_dim to 128-lane multiples in the wrapper for
    # realistic model sizes; at E=32 / Dh=8 every layout here is sub-lane.
    def to_heads(t):                          # (B, S, E) -> (H*B, S, Dh)
        return jnp.stack([t[:, :, h * Dh:(h + 1) * Dh] for h in range(H)],
                         axis=0).reshape(H * B, S, Dh)

    qh, kh, vh = to_heads(q), to_heads(k), to_heads(v)

    mask_hb = jnp.broadcast_to(mask_ref[...][None],
                               (H, B, 1, S)).reshape(H * B, 1, S)

    s = jnp.einsum('bqd,bkd->bqk', qh, kh,
                   preferred_element_type=jnp.float32)     # (H*B, S, S)
    s = s + mask_hb                                         # key padding, once
    s = s - jnp.max(s, axis=-1, keepdims=True)
    p = jnp.exp(s)
    p = p * pl.reciprocal(jnp.sum(p, axis=-1, keepdims=True), approx=True)
    ctx_h = jnp.einsum('bqk,bkd->bqd', p.astype(jnp.bfloat16), vh,
                       preferred_element_type=jnp.float32)  # (H*B, S, Dh)

    # Single full-width concat back to (M, E); no per-head VMEM scratch.
    ctx4 = ctx_h.reshape(H, B, S, Dh)
    ctx = jnp.concatenate([ctx4[h] for h in range(H)], axis=-1).reshape(M, E)

    attn = jnp.dot(ctx.astype(jnp.bfloat16), w_o_ref[...],
                   preferred_element_type=jnp.float32) + b_o

    # ---- residual + LayerNorm (f32); var = E[x^2] - mu^2 (one fewer pass) ---
    def layer_norm(u, w, b):
        mu = jnp.mean(u, axis=-1, keepdims=True)
        var = jnp.mean(u * u, axis=-1, keepdims=True) - mu * mu
        return (u - mu) * jax.lax.rsqrt(var + eps) * w + b

    y = layer_norm(xf + attn, ln1_w, ln1_b)

    # ---- feed-forward (ReLU), bf16 MXU / f32 accumulation --------------------
    h1 = jnp.maximum(
        jnp.dot(y.astype(jnp.bfloat16), w1_ref[...],
                preferred_element_type=jnp.float32) + b1, 0.0)
    z = jnp.dot(h1.astype(jnp.bfloat16), w2_ref[...],
                preferred_element_type=jnp.float32) + b2

    z = layer_norm(y + z, ln2_w, ln2_b)

    out_ref[...] = z.reshape(B, S, E)


# ----------------------------------------------------------------------------
# Generation-aware tiling heuristics.
# ----------------------------------------------------------------------------
def _device_vmem_and_cores():
    """Best-effort VMEM capacity + TensorCore count; conservative fallbacks."""
    vmem_bytes = 64 * 1024 * 1024            # safe for every generation
    n_cores = 1
    try:
        info = pltpu.get_tpu_info()
        vmem_bytes = int(getattr(info, "vmem_capacity_bytes", vmem_bytes))
    except Exception:
        pass
    try:
        kind = jax.devices()[0].device_kind.lower()
        if ("v7" in kind) or ("v4" in kind) or ("v5p" in kind):
            n_cores = 2                       # megacore: 2 TCs share the grid
        if "v7" in kind:
            vmem_bytes = min(vmem_bytes, 64 * 1024 * 1024)  # 64 MiB / TC
    except Exception:
        pass
    return vmem_bytes, n_cores


def _choose_block_b(N, S, E, F, H, vmem_bytes, n_cores):
    """Largest batch tile that fits a VMEM budget; nb=1 on single-TC parts,
    nb>=n_cores on megacore parts (so both TensorCores get work)."""
    W = _round_up(max(3 * E, F), 128)
    # Per-layer weights (bf16, double-buffered along the layer axis) + vecs.
    weight_bytes = 2 * (2 * (E * 3 * E + E * E + E * F + F * E) + 8 * W * 4)

    def tile_bytes(bb):
        M = bb * S
        resident = 2 * bb * S * E * 4                       # in + out tiles
        inter = (3 * M * E + 2 * M * E + M * F + bb * H * S * S) * 4
        return resident + inter

    budget = int(vmem_bytes * 0.55)
    for nb in range(1, N + 1):
        if N % nb:
            continue
        if nb < n_cores:
            continue
        bb = N // nb
        if weight_bytes + tile_bytes(bb) <= budget:
            return bb
    return 1


# ----------------------------------------------------------------------------
# text_encoder forward (wrapper = glue only; all math is inside the kernel).
# src: (S, N, E) float32, text: (N, S) int — same contract as the PyTorch module.
# ----------------------------------------------------------------------------
def text_encoder_forward(src, text, stacked, heads, *, block_b=None):
    S, N, E = src.shape
    L = stacked["w_in_t"].shape[0]
    F = stacked["w1_t"].shape[2]
    W = stacked["vecs"].shape[2]

    x = jnp.transpose(src, (1, 0, 2)).astype(jnp.float32)          # (N, S, E)
    mask_add = jnp.where(text == 0, jnp.float32(MASK_VALUE),
                         jnp.float32(0.0))[:, None, :]              # (N, 1, S)

    vmem_bytes, n_cores = _device_vmem_and_cores()
    if block_b is None:
        block_b = _choose_block_b(N, S, E, F, heads, vmem_bytes, n_cores)
    assert N % block_b == 0
    nb = N // block_b

    kernel = functools.partial(_encoder_stack_kernel, heads=heads,
                               head_dim=E // heads, eps=1e-5)

    def wspec(*tail):
        nd = len(tail)
        # Stacked per-layer parameter: squeeze the leading layer dim, index by
        # the layer grid axis (l).
        return pl.BlockSpec((None,) + tuple(tail),
                            lambda b, l, _nd=nd: (l,) + (0,) * _nd)

    in_specs = [
        pl.BlockSpec((block_b, S, E), lambda b, l: (b, 0, 0)),   # x (per tile)
        pl.BlockSpec((block_b, 1, S), lambda b, l: (b, 0, 0)),   # additive mask
        wspec(E, 3 * E),                                         # in-proj W^T
        wspec(E, E),                                             # out-proj W^T
        wspec(E, F),                                             # FFN lin1 W^T
        wspec(F, E),                                             # FFN lin2 W^T
        wspec(8, W),                                             # packed vectors
    ]

    vmem_limit = max(32 * 1024 * 1024,
                     min(int(vmem_bytes * 0.8), 100 * 1024 * 1024))

    out = pl.pallas_call(
        kernel,
        out_shape=jax.ShapeDtypeStruct((N, S, E), jnp.float32),
        grid=(nb, L),
        in_specs=in_specs,
        # Constant block index along the layer axis -> activation stays
        # resident in VMEM across all layers of a batch tile.
        out_specs=pl.BlockSpec((block_b, S, E), lambda b, l: (b, 0, 0)),
        compiler_params=pltpu.CompilerParams(
            dimension_semantics=("parallel", "arbitrary"),
            vmem_limit_bytes=vmem_limit),
    )(x, mask_add,
      stacked["w_in_t"], stacked["w_o_t"], stacked["w1_t"], stacked["w2_t"],
      stacked["vecs"])

    return jnp.transpose(out, (1, 0, 2))                           # (S, N, E)


# ----------------------------------------------------------------------------
# Parameter handling.
# ----------------------------------------------------------------------------
def init_params(key, num_layers, E, F):
    """Deterministic synthetic f32 params, shapes from nn.TransformerEncoderLayer."""
    layers = []
    for i in range(num_layers):
        ks = jax.random.split(jax.random.fold_in(key, i), 8)
        w_in = 0.02 * jax.random.normal(ks[0], (3 * E, E), jnp.float32)
        b_in = 0.01 * jax.random.normal(ks[1], (3 * E,), jnp.float32)
        w_o = 0.02 * jax.random.normal(ks[2], (E, E), jnp.float32)
        b_o = 0.01 * jax.random.normal(ks[3], (E,), jnp.float32)
        w1 = 0.02 * jax.random.normal(ks[4], (F, E), jnp.float32)
        b1 = 0.01 * jax.random.normal(ks[5], (F,), jnp.float32)
        w2 = 0.02 * jax.random.normal(ks[6], (E, F), jnp.float32)
        b2 = 0.01 * jax.random.normal(ks[7], (E,), jnp.float32)
        layers.append(dict(
            w_in_t=w_in.T, b_in=b_in.reshape(1, -1),
            w_o_t=w_o.T, b_o=b_o.reshape(1, -1),
            ln1_w=jnp.ones((1, E), jnp.float32), ln1_b=jnp.zeros((1, E), jnp.float32),
            w1_t=w1.T, b1=b1.reshape(1, -1),
            w2_t=w2.T, b2=b2.reshape(1, -1),
            ln2_w=jnp.ones((1, E), jnp.float32), ln2_b=jnp.zeros((1, E), jnp.float32),
        ))
    return layers


def prepare_stacked_params(layer_params, E, heads):
    """Stack per-layer params with a leading L dim, cast matmul weights to
    bf16, fold the 1/sqrt(head_dim) scale into the query projection, and pack
    the 8 small vectors into one (L, 8, W) array (one DMA per layer step)."""
    scale = 1.0 / math.sqrt(E // heads)
    F = layer_params[0]["w1_t"].shape[1]
    W = _round_up(max(3 * E, F), 128)

    def row(v):
        v = jnp.reshape(v, (-1,)).astype(jnp.float32)
        return jnp.pad(v, (0, W - v.shape[0]))

    w_in, w_o, w1, w2, vecs = [], [], [], [], []
    for p in layer_params:
        w_in_t = jnp.concatenate([p["w_in_t"][:, :E] * scale,
                                  p["w_in_t"][:, E:]], axis=1)
        b_in = jnp.concatenate([p["b_in"][:, :E] * scale,
                                p["b_in"][:, E:]], axis=1)
        w_in.append(w_in_t.astype(jnp.bfloat16))
        w_o.append(p["w_o_t"].astype(jnp.bfloat16))
        w1.append(p["w1_t"].astype(jnp.bfloat16))
        w2.append(p["w2_t"].astype(jnp.bfloat16))
        vecs.append(jnp.stack([
            row(b_in), row(p["b1"]), row(p["b_o"]),
            row(p["ln1_w"]), row(p["ln1_b"]), row(p["b2"]),
            row(p["ln2_w"]), row(p["ln2_b"])], axis=0))            # (8, W)
    return dict(w_in_t=jnp.stack(w_in), w_o_t=jnp.stack(w_o),
                w1_t=jnp.stack(w1), w2_t=jnp.stack(w2),
                vecs=jnp.stack(vecs))


# ----------------------------------------------------------------------------
# Pure-JAX f32 reference (for self-check).
# ----------------------------------------------------------------------------
def _ref_layer(x, mask_add, p, heads):
    N, S, E = x.shape
    Dh = E // heads
    qkv = x @ p["w_in_t"] + p["b_in"]
    q, k, v = qkv[..., :E], qkv[..., E:2 * E], qkv[..., 2 * E:]
    q = q.reshape(N, S, heads, Dh)
    k = k.reshape(N, S, heads, Dh)
    v = v.reshape(N, S, heads, Dh)
    s = jnp.einsum('nqhd,nkhd->nhqk', q, k) / (Dh ** 0.5)
    s = s + mask_add[:, :, None, :]
    a = jax.nn.softmax(s, axis=-1)
    ctx = jnp.einsum('nhqk,nkhd->nqhd', a, v).reshape(N, S, E)
    attn = ctx @ p["w_o_t"] + p["b_o"]

    def ln(u, w, b):
        mu = jnp.mean(u, axis=-1, keepdims=True)
        var = jnp.mean((u - mu) ** 2, axis=-1, keepdims=True)
        return (u - mu) / jnp.sqrt(var + 1e-5) * w + b

    y = ln(x + attn, p["ln1_w"], p["ln1_b"])
    z = jnp.maximum(y @ p["w1_t"] + p["b1"], 0.0) @ p["w2_t"] + p["b2"]
    return ln(y + z, p["ln2_w"], p["ln2_b"])


def text_encoder_ref(src, text, layer_params, heads):
    x = jnp.transpose(src, (1, 0, 2)).astype(jnp.float32)
    mask_add = jnp.where(text == 0, jnp.float32(MASK_VALUE),
                         jnp.float32(0.0))[:, None, :]
    for p in layer_params:
        x = _ref_layer(x, mask_add, p, heads)
    return jnp.transpose(x, (1, 0, 2))


if __name__ == "__main__":
    # seq=8, batch=2, embed=32, heads=4, dim_feedforward=64, num_layers=2,
    # dropout=0.1 (no-op at eval).
    S, N, E, H, F, L = 8, 2, 32, 4, 64, 2

    key = jax.random.PRNGKey(0)
    k_src, k_tok, k_par = jax.random.split(key, 3)

    src = jax.random.normal(k_src, (S, N, E), jnp.float32)           # (S, N, E)
    text = jax.random.randint(k_tok, (N, S), 0, 5)                    # (N, S); 0 = pad
    text = text.at[:, 0].set(1)                                       # keep >=1 valid token

    params = init_params(k_par, L, E, F)
    stacked = prepare_stacked_params(params, E, H)

    out = text_encoder_forward(src, text, stacked, heads=H)
    out = jax.block_until_ready(out)

    assert out.shape == (S, N, E)
    assert bool(jnp.all(jnp.isfinite(out)))

    ref = text_encoder_ref(src, text, params, heads=H)
    max_err = float(jnp.max(jnp.abs(out - ref)))
    # Kernel uses bf16 matmul operands (f32 accumulation) + approx reciprocal,
    # so compare against the strict f32 reference with a bf16-level tolerance.
    assert max_err < 5e-2, f"mismatch vs f32 reference: {max_err}"

    print("KERNEL_OK")
</pallas_src>

<mosaic_0001>
module attributes {stable_mosaic.version = 11 : i64} {
  func.func @_encoder_stack_kernel(%arg0: i32, %arg1: i32, %arg2: memref<2x8x32xf32, #tpu.memory_space<vmem>>, %arg3: memref<2x1x8xf32, #tpu.memory_space<vmem>>, %arg4: memref<1x32x96xbf16, #tpu.memory_space<vmem>>, %arg5: memref<1x32x32xbf16, #tpu.memory_space<vmem>>, %arg6: memref<1x32x64xbf16, #tpu.memory_space<vmem>>, %arg7: memref<1x64x32xbf16, #tpu.memory_space<vmem>>, %arg8: memref<1x8x128xf32, #tpu.memory_space<vmem>>, %arg9: memref<2x8x32xf32, #tpu.memory_space<vmem>>) attributes {dimension_semantics = [#tpu.dimension_semantics<parallel>, #tpu.dimension_semantics<arbitrary>], iteration_bounds = array<i64: 1, 2>, scalar_prefetch = 0 : i64, scratch_operands = 0 : i64, tpu.core_type = #tpu.core_type<tc>, window_params = [{transform_indices = @transform_0, window_bounds = array<i64: 2, 8, 32>}, {transform_indices = @transform_1, window_bounds = array<i64: 2, 1, 8>}, {transform_indices = @transform_2, window_bounds = array<i64: 1, 32, 96>}, {transform_indices = @transform_3, window_bounds = array<i64: 1, 32, 32>}, {transform_indices = @transform_4, window_bounds = array<i64: 1, 32, 64>}, {transform_indices = @transform_5, window_bounds = array<i64: 1, 64, 32>}, {transform_indices = @transform_6, window_bounds = array<i64: 1, 8, 128>}, {transform_indices = @transform_7, window_bounds = array<i64: 2, 8, 32>}]} {
    %c0_i32 = arith.constant 0 : i32
    %0 = arith.cmpi eq, %arg1, %c0_i32 : i32
    %1 = arith.extui %0 : i1 to i32
    %c0_i32_0 = arith.constant 0 : i32
    %2 = arith.cmpi ne, %1, %c0_i32_0 : i32
    scf.if %2 {
      %c0_42 = arith.constant 0 : index
      %c0_43 = arith.constant 0 : index
      %c0_44 = arith.constant 0 : index
      %159 = vector.load %arg2[%c0_42, %c0_43, %c0_44] : memref<2x8x32xf32, #tpu.memory_space<vmem>>, vector<2x8x32xf32>
      %c0_45 = arith.constant 0 : index
      %c0_46 = arith.constant 0 : index
      %c0_47 = arith.constant 0 : index
      %160 = vector.load %arg9[%c0_45, %c0_46, %c0_47] : memref<2x8x32xf32, #tpu.memory_space<vmem>>, vector<2x8x32xf32>
      tpu.vector_store %arg9[%c0_45, %c0_46, %c0_47], %159 {strides = array<i32>} : memref<2x8x32xf32, #tpu.memory_space<vmem>>, vector<2x8x32xf32>,
    } else {
    }
    %c0 = arith.constant 0 : index
    %c0_1 = arith.constant 0 : index
    %c0_2 = arith.constant 0 : index
    %3 = vector.load %arg8[%c0, %c0_1, %c0_2] : memref<1x8x128xf32, #tpu.memory_space<vmem>>, vector<1x8x128xf32>
    %4 = vector.shape_cast %3 : vector<1x8x128xf32> to vector<8x128xf32>
    %5 = vector.extract_strided_slice %4 {offsets = [0, 0], sizes = [1, 96], strides = [1, 1]} : vector<8x128xf32> to vector<1x96xf32>
    %6 = vector.extract_strided_slice %4 {offsets = [1, 0], sizes = [1, 64], strides = [1, 1]} : vector<8x128xf32> to vector<1x64xf32>
    %7 = vector.extract_strided_slice %4 {offsets = [2, 0], sizes = [1, 32], strides = [1, 1]} : vector<8x128xf32> to vector<1x32xf32>
    %8 = vector.extract_strided_slice %4 {offsets = [3, 0], sizes = [1, 32], strides = [1, 1]} : vector<8x128xf32> to vector<1x32xf32>
    %9 = vector.extract_strided_slice %4 {offsets = [4, 0], sizes = [1, 32], strides = [1, 1]} : vector<8x128xf32> to vector<1x32xf32>
    %10 = vector.extract_strided_slice %4 {offsets = [5, 0], sizes = [1, 32], strides = [1, 1]} : vector<8x128xf32> to vector<1x32xf32>
    %11 = vector.extract_strided_slice %4 {offsets = [6, 0], sizes = [1, 32], strides = [1, 1]} : vector<8x128xf32> to vector<1x32xf32>
    %12 = vector.extract_strided_slice %4 {offsets = [7, 0], sizes = [1, 32], strides = [1, 1]} : vector<8x128xf32> to vector<1x32xf32>
    %c0_3 = arith.constant 0 : index
    %c0_4 = arith.constant 0 : index
    %c0_5 = arith.constant 0 : index
    %13 = vector.load %arg9[%c0_3, %c0_4, %c0_5] : memref<2x8x32xf32, #tpu.memory_space<vmem>>, vector<2x8x32xf32>
    %14 = vector.shape_cast %13 : vector<2x8x32xf32> to vector<16x32xf32>
    %15 = arith.truncf %14 : vector<16x32xf32> to vector<16x32xbf16>
    %c0_6 = arith.constant 0 : index
    %c0_7 = arith.constant 0 : index
    %c0_8 = arith.constant 0 : index
    %16 = vector.load %arg4[%c0_6, %c0_7, %c0_8] : memref<1x32x96xbf16, #tpu.memory_space<vmem>>, vector<1x32x96xbf16>
    %17 = vector.shape_cast %16 : vector<1x32x96xbf16> to vector<32x96xbf16>
    %cst = arith.constant dense<0.000000e+00> : vector<16x96xf32>
    %18 = tpu.matmul %15, %17, %cst {dimension_numbers = #tpu.dot_dimension_numbers<[1], [0], [0], [1], [0, 0, 1, 1], [], []>} : vector<16x32xbf16>, vector<32x96xbf16>, vector<16x96xf32> -> vector<16x96xf32>
    %19 = vector.broadcast %5 : vector<1x96xf32> to vector<16x96xf32>
    %20 = arith.addf %18, %19 : vector<16x96xf32>
    %21 = vector.extract_strided_slice %20 {offsets = [0, 0], sizes = [16, 32], strides = [1, 1]} : vector<16x96xf32> to vector<16x32xf32>
    %22 = vector.shape_cast %21 : vector<16x32xf32> to vector<2x8x32xf32>
    %23 = arith.truncf %22 : vector<2x8x32xf32> to vector<2x8x32xbf16>
    %24 = vector.extract_strided_slice %20 {offsets = [0, 32], sizes = [16, 32], strides = [1, 1]} : vector<16x96xf32> to vector<16x32xf32>
    %25 = vector.shape_cast %24 : vector<16x32xf32> to vector<2x8x32xf32>
    %26 = arith.truncf %25 : vector<2x8x32xf32> to vector<2x8x32xbf16>
    %27 = vector.extract_strided_slice %20 {offsets = [0, 64], sizes = [16, 32], strides = [1, 1]} : vector<16x96xf32> to vector<16x32xf32>
    %28 = vector.shape_cast %27 : vector<16x32xf32> to vector<2x8x32xf32>
    %29 = arith.truncf %28 : vector<2x8x32xf32> to vector<2x8x32xbf16>
    %30 = vector.extract_strided_slice %23 {offsets = [0, 0, 0], sizes = [2, 8, 8], strides = [1, 1, 1]} : vector<2x8x32xbf16> to vector<2x8x8xbf16>
    %31 = vector.extract_strided_slice %23 {offsets = [0, 0, 8], sizes = [2, 8, 8], strides = [1, 1, 1]} : vector<2x8x32xbf16> to vector<2x8x8xbf16>
    %32 = vector.extract_strided_slice %23 {offsets = [0, 0, 16], sizes = [2, 8, 8], strides = [1, 1, 1]} : vector<2x8x32xbf16> to vector<2x8x8xbf16>
    %33 = vector.extract_strided_slice %23 {offsets = [0, 0, 24], sizes = [2, 8, 8], strides = [1, 1, 1]} : vector<2x8x32xbf16> to vector<2x8x8xbf16>
    %34 = vector.shape_cast %30 : vector<2x8x8xbf16> to vector<1x2x8x8xbf16>
    %35 = vector.shape_cast %31 : vector<2x8x8xbf16> to vector<1x2x8x8xbf16>
    %36 = vector.shape_cast %32 : vector<2x8x8xbf16> to vector<1x2x8x8xbf16>
    %37 = vector.shape_cast %33 : vector<2x8x8xbf16> to vector<1x2x8x8xbf16>
    %38 = tpu.concatenate %34, %35, %36, %37 in 0 : vector<1x2x8x8xbf16>, vector<1x2x8x8xbf16>, vector<1x2x8x8xbf16>, vector<1x2x8x8xbf16> -> vector<4x2x8x8xbf16>
    %39 = vector.shape_cast %38 : vector<4x2x8x8xbf16> to vector<8x8x8xbf16>
    %40 = vector.extract_strided_slice %26 {offsets = [0, 0, 0], sizes = [2, 8, 8], strides = [1, 1, 1]} : vector<2x8x32xbf16> to vector<2x8x8xbf16>
    %41 = vector.extract_strided_slice %26 {offsets = [0, 0, 8], sizes = [2, 8, 8], strides = [1, 1, 1]} : vector<2x8x32xbf16> to vector<2x8x8xbf16>
    %42 = vector.extract_strided_slice %26 {offsets = [0, 0, 16], sizes = [2, 8, 8], strides = [1, 1, 1]} : vector<2x8x32xbf16> to vector<2x8x8xbf16>
    %43 = vector.extract_strided_slice %26 {offsets = [0, 0, 24], sizes = [2, 8, 8], strides = [1, 1, 1]} : vector<2x8x32xbf16> to vector<2x8x8xbf16>
    %44 = vector.shape_cast %40 : vector<2x8x8xbf16> to vector<1x2x8x8xbf16>
    %45 = vector.shape_cast %41 : vector<2x8x8xbf16> to vector<1x2x8x8xbf16>
    %46 = vector.shape_cast %42 : vector<2x8x8xbf16> to vector<1x2x8x8xbf16>
    %47 = vector.shape_cast %43 : vector<2x8x8xbf16> to vector<1x2x8x8xbf16>
    %48 = tpu.concatenate %44, %45, %46, %47 in 0 : vector<1x2x8x8xbf16>, vector<1x2x8x8xbf16>, vector<1x2x8x8xbf16>, vector<1x2x8x8xbf16> -> vector<4x2x8x8xbf16>
    %49 = vector.shape_cast %48 : vector<4x2x8x8xbf16> to vector<8x8x8xbf16>
    %50 = vector.extract_strided_slice %29 {offsets = [0, 0, 0], sizes = [2, 8, 8], strides = [1, 1, 1]} : vector<2x8x32xbf16> to vector<2x8x8xbf16>
    %51 = vector.extract_strided_slice %29 {offsets = [0, 0, 8], sizes = [2, 8, 8], strides = [1, 1, 1]} : vector<2x8x32xbf16> to vector<2x8x8xbf16>
    %52 = vector.extract_strided_slice %29 {offsets = [0, 0, 16], sizes = [2, 8, 8], strides = [1, 1, 1]} : vector<2x8x32xbf16> to vector<2x8x8xbf16>
    %53 = vector.extract_strided_slice %29 {offsets = [0, 0, 24], sizes = [2, 8, 8], strides = [1, 1, 1]} : vector<2x8x32xbf16> to vector<2x8x8xbf16>
    %54 = vector.shape_cast %50 : vector<2x8x8xbf16> to vector<1x2x8x8xbf16>
    %55 = vector.shape_cast %51 : vector<2x8x8xbf16> to vector<1x2x8x8xbf16>
    %56 = vector.shape_cast %52 : vector<2x8x8xbf16> to vector<1x2x8x8xbf16>
    %57 = vector.shape_cast %53 : vector<2x8x8xbf16> to vector<1x2x8x8xbf16>
    %58 = tpu.concatenate %54, %55, %56, %57 in 0 : vector<1x2x8x8xbf16>, vector<1x2x8x8xbf16>, vector<1x2x8x8xbf16>, vector<1x2x8x8xbf16> -> vector<4x2x8x8xbf16>
    %59 = vector.shape_cast %58 : vector<4x2x8x8xbf16> to vector<8x8x8xbf16>
    %c0_9 = arith.constant 0 : index
    %c0_10 = arith.constant 0 : index
    %c0_11 = arith.constant 0 : index
    %60 = vector.load %arg3[%c0_9, %c0_10, %c0_11] : memref<2x1x8xf32, #tpu.memory_space<vmem>>, vector<2x1x8xf32>
    %61 = vector.shape_cast %60 : vector<2x1x8xf32> to vector<1x2x1x8xf32>
    %62 = vector.shape_cast %61 : vector<1x2x1x8xf32> to vector<1x2x1x8xf32>
    %63 = vector.broadcast %62 : vector<1x2x1x8xf32> to vector<4x2x1x8xf32>
    %64 = vector.shape_cast %63 : vector<4x2x1x8xf32> to vector<8x1x8xf32>
    "tpu.trace_start"() <{level = 10 : i32, message = "bqd,bkd->bqk"}> : () -> ()
    %cst_12 = arith.constant dense<0.000000e+00> : vector<8x8x8xf32>
    %65 = tpu.matmul %39, %49, %cst_12 {dimension_numbers = #tpu.dot_dimension_numbers<[2], [2], [1], [1], [0, 0, 0, 1, 1, 1], [0], [0]>} : vector<8x8x8xbf16>, vector<8x8x8xbf16>, vector<8x8x8xf32> -> vector<8x8x8xf32>
    "tpu.trace_stop"() : () -> ()
    %66 = vector.broadcast %64 : vector<8x1x8xf32> to vector<8x8x8xf32>
    %67 = arith.addf %65, %66 : vector<8x8x8xf32>
    %cst_13 = arith.constant dense<0xFF800000> : vector<8x8xf32>
    %68 = vector.multi_reduction <maximumf>, %67, %cst_13 [2] : vector<8x8x8xf32> to vector<8x8xf32>
    %69 = vector.shape_cast %68 : vector<8x8xf32> to vector<8x8x1xf32>
    %70 = vector.broadcast %69 : vector<8x8x1xf32> to vector<8x8x8xf32>
    %71 = arith.subf %67, %70 : vector<8x8x8xf32>
    %72 = math.exp %71 : vector<8x8x8xf32>
    %cst_14 = arith.constant dense<0.000000e+00> : vector<8x8xf32>
    %73 = vector.multi_reduction <add>, %72, %cst_14 [2] : vector<8x8x8xf32> to vector<8x8xf32>
    %74 = vector.shape_cast %73 : vector<8x8xf32> to vector<8x8x1xf32>
    %75 = tpu.reciprocal %74 {approx = true} : vector<8x8x1xf32> -> vector<8x8x1xf32>
    %76 = vector.broadcast %75 : vector<8x8x1xf32> to vector<8x8x8xf32>
    %77 = arith.mulf %72, %76 : vector<8x8x8xf32>
    %78 = arith.truncf %77 : vector<8x8x8xf32> to vector<8x8x8xbf16>
    "tpu.trace_start"() <{level = 10 : i32, message = "bqk,bkd->bqd"}> : () -> ()
    %cst_15 = arith.constant dense<0.000000e+00> : vector<8x8x8xf32>
    %79 = tpu.matmul %78, %59, %cst_15 {dimension_numbers = #tpu.dot_dimension_numbers<[2], [1], [1], [2], [0, 0, 0, 1, 1, 2], [0], [0]>} : vector<8x8x8xbf16>, vector<8x8x8xbf16>, vector<8x8x8xf32> -> vector<8x8x8xf32>
    "tpu.trace_stop"() : () -> ()
    %80 = vector.shape_cast %79 : vector<8x8x8xf32> to vector<4x2x8x8xf32>
    %81 = vector.extract_strided_slice %80 {offsets = [0, 0, 0, 0], sizes = [1, 2, 8, 8], strides = [1, 1, 1, 1]} : vector<4x2x8x8xf32> to vector<1x2x8x8xf32>
    %82 = vector.shape_cast %81 : vector<1x2x8x8xf32> to vector<2x8x8xf32>
    %83 = vector.extract_strided_slice %80 {offsets = [1, 0, 0, 0], sizes = [1, 2, 8, 8], strides = [1, 1, 1, 1]} : vector<4x2x8x8xf32> to vector<1x2x8x8xf32>
    %84 = vector.shape_cast %83 : vector<1x2x8x8xf32> to vector<2x8x8xf32>
    %85 = vector.extract_strided_slice %80 {offsets = [2, 0, 0, 0], sizes = [1, 2, 8, 8], strides = [1, 1, 1, 1]} : vector<4x2x8x8xf32> to vector<1x2x8x8xf32>
    %86 = vector.shape_cast %85 : vector<1x2x8x8xf32> to vector<2x8x8xf32>
    %87 = vector.extract_strided_slice %80 {offsets = [3, 0, 0, 0], sizes = [1, 2, 8, 8], strides = [1, 1, 1, 1]} : vector<4x2x8x8xf32> to vector<1x2x8x8xf32>
    %88 = vector.shape_cast %87 : vector<1x2x8x8xf32> to vector<2x8x8xf32>
    %89 = tpu.concatenate %82, %84, %86, %88 in 2 : vector<2x8x8xf32>, vector<2x8x8xf32>, vector<2x8x8xf32>, vector<2x8x8xf32> -> vector<2x8x32xf32>
    %90 = vector.shape_cast %89 : vector<2x8x32xf32> to vector<16x32xf32>
    %91 = arith.truncf %90 : vector<16x32xf32> to vector<16x32xbf16>
    %c0_16 = arith.constant 0 : index
    %c0_17 = arith.constant 0 : index
    %c0_18 = arith.constant 0 : index
    %92 = vector.load %arg5[%c0_16, %c0_17, %c0_18] : memref<1x32x32xbf16, #tpu.memory_space<vmem>>, vector<1x32x32xbf16>
    %93 = vector.shape_cast %92 : vector<1x32x32xbf16> to vector<32x32xbf16>
    %cst_19 = arith.constant dense<0.000000e+00> : vector<16x32xf32>
    %94 = tpu.matmul %91, %93, %cst_19 {dimension_numbers = #tpu.dot_dimension_numbers<[1], [0], [0], [1], [0, 0, 1, 1], [], []>} : vector<16x32xbf16>, vector<32x32xbf16>, vector<16x32xf32> -> vector<16x32xf32>
    %95 = vector.broadcast %7 : vector<1x32xf32> to vector<16x32xf32>
    %96 = arith.addf %94, %95 : vector<16x32xf32>
    %97 = arith.addf %14, %96 : vector<16x32xf32>
    %cst_20 = arith.constant dense<0.000000e+00> : vector<16xf32>
    %98 = vector.multi_reduction <add>, %97, %cst_20 [1] : vector<16x32xf32> to vector<16xf32>
    %99 = vector.shape_cast %98 : vector<16xf32> to vector<16x1xf32>
    %cst_21 = arith.constant 3.200000e+01 : f32
    %100 = vector.broadcast %cst_21 : f32 to vector<16x1xf32>
    %101 = arith.divf %99, %100 : vector<16x1xf32>
    %102 = arith.mulf %97, %97 : vector<16x32xf32>
    %cst_22 = arith.constant dense<0.000000e+00> : vector<16xf32>
    %103 = vector.multi_reduction <add>, %102, %cst_22 [1] : vector<16x32xf32> to vector<16xf32>
    %104 = vector.shape_cast %103 : vector<16xf32> to vector<16x1xf32>
    %cst_23 = arith.constant 3.200000e+01 : f32
    %105 = vector.broadcast %cst_23 : f32 to vector<16x1xf32>
    %106 = arith.divf %104, %105 : vector<16x1xf32>
    %107 = arith.mulf %101, %101 : vector<16x1xf32>
    %108 = arith.subf %106, %107 : vector<16x1xf32>
    %109 = vector.broadcast %101 : vector<16x1xf32> to vector<16x32xf32>
    %110 = arith.subf %97, %109 : vector<16x32xf32>
    %cst_24 = arith.constant 9.99999974E-6 : f32
    %111 = vector.broadcast %cst_24 : f32 to vector<16x1xf32>
    %112 = arith.addf %108, %111 : vector<16x1xf32>
    %113 = math.rsqrt %112 : vector<16x1xf32>
    %114 = vector.broadcast %113 : vector<16x1xf32> to vector<16x32xf32>
    %115 = arith.mulf %110, %114 : vector<16x32xf32>
    %116 = vector.broadcast %8 : vector<1x32xf32> to vector<16x32xf32>
    %117 = arith.mulf %115, %116 : vector<16x32xf32>
    %118 = vector.broadcast %9 : vector<1x32xf32> to vector<16x32xf32>
    %119 = arith.addf %117, %118 : vector<16x32xf32>
    %120 = arith.truncf %119 : vector<16x32xf32> to vector<16x32xbf16>
    %c0_25 = arith.constant 0 : index
    %c0_26 = arith.constant 0 : index
    %c0_27 = arith.constant 0 : index
    %121 = vector.load %arg6[%c0_25, %c0_26, %c0_27] : memref<1x32x64xbf16, #tpu.memory_space<vmem>>, vector<1x32x64xbf16>
    %122 = vector.shape_cast %121 : vector<1x32x64xbf16> to vector<32x64xbf16>
    %cst_28 = arith.constant dense<0.000000e+00> : vector<16x64xf32>
    %123 = tpu.matmul %120, %122, %cst_28 {dimension_numbers = #tpu.dot_dimension_numbers<[1], [0], [0], [1], [0, 0, 1, 1], [], []>} : vector<16x32xbf16>, vector<32x64xbf16>, vector<16x64xf32> -> vector<16x64xf32>
    %124 = vector.broadcast %6 : vector<1x64xf32> to vector<16x64xf32>
    %125 = arith.addf %123, %124 : vector<16x64xf32>
    %cst_29 = arith.constant 0.000000e+00 : f32
    %126 = vector.broadcast %cst_29 : f32 to vector<16x64xf32>
    %127 = arith.maximumf %125, %126 : vector<16x64xf32>
    %128 = arith.truncf %127 : vector<16x64xf32> to vector<16x64xbf16>
    %c0_30 = arith.constant 0 : index
    %c0_31 = arith.constant 0 : index
    %c0_32 = arith.constant 0 : index
    %129 = vector.load %arg7[%c0_30, %c0_31, %c0_32] : memref<1x64x32xbf16, #tpu.memory_space<vmem>>, vector<1x64x32xbf16>
    %130 = vector.shape_cast %129 : vector<1x64x32xbf16> to vector<64x32xbf16>
    %cst_33 = arith.constant dense<0.000000e+00> : vector<16x32xf32>
    %131 = tpu.matmul %128, %130, %cst_33 {dimension_numbers = #tpu.dot_dimension_numbers<[1], [0], [0], [1], [0, 0, 1, 1], [], []>} : vector<16x64xbf16>, vector<64x32xbf16>, vector<16x32xf32> -> vector<16x32xf32>
    %132 = vector.broadcast %10 : vector<1x32xf32> to vector<16x32xf32>
    %133 = arith.addf %131, %132 : vector<16x32xf32>
    %134 = arith.addf %119, %133 : vector<16x32xf32>
    %cst_34 = arith.constant dense<0.000000e+00> : vector<16xf32>
    %135 = vector.multi_reduction <add>, %134, %cst_34 [1] : vector<16x32xf32> to vector<16xf32>
    %136 = vector.shape_cast %135 : vector<16xf32> to vector<16x1xf32>
    %cst_35 = arith.constant 3.200000e+01 : f32
    %137 = vector.broadcast %cst_35 : f32 to vector<16x1xf32>
    %138 = arith.divf %136, %137 : vector<16x1xf32>
    %139 = arith.mulf %134, %134 : vector<16x32xf32>
    %cst_36 = arith.constant dense<0.000000e+00> : vector<16xf32>
    %140 = vector.multi_reduction <add>, %139, %cst_36 [1] : vector<16x32xf32> to vector<16xf32>
    %141 = vector.shape_cast %140 : vector<16xf32> to vector<16x1xf32>
    %cst_37 = arith.constant 3.200000e+01 : f32
    %142 = vector.broadcast %cst_37 : f32 to vector<16x1xf32>
    %143 = arith.divf %141, %142 : vector<16x1xf32>
    %144 = arith.mulf %138, %138 : vector<16x1xf32>
    %145 = arith.subf %143, %144 : vector<16x1xf32>
    %146 = vector.broadcast %138 : vector<16x1xf32> to vector<16x32xf32>
    %147 = arith.subf %134, %146 : vector<16x32xf32>
    %cst_38 = arith.constant 9.99999974E-6 : f32
    %148 = vector.broadcast %cst_38 : f32 to vector<16x1xf32>
    %149 = arith.addf %145, %148 : vector<16x1xf32>
    %150 = math.rsqrt %149 : vector<16x1xf32>
    %151 = vector.broadcast %150 : vector<16x1xf32> to vector<16x32xf32>
    %152 = arith.mulf %147, %151 : vector<16x32xf32>
    %153 = vector.broadcast %11 : vector<1x32xf32> to vector<16x32xf32>
    %154 = arith.mulf %152, %153 : vector<16x32xf32>
    %155 = vector.broadcast %12 : vector<1x32xf32> to vector<16x32xf32>
    %156 = arith.addf %154, %155 : vector<16x32xf32>
    %157 = vector.shape_cast %156 : vector<16x32xf32> to vector<2x8x32xf32>
    %c0_39 = arith.constant 0 : index
    %c0_40 = arith.constant 0 : index
    %c0_41 = arith.constant 0 : index
    %158 = vector.load %arg9[%c0_39, %c0_40, %c0_41] : memref<2x8x32xf32, #tpu.memory_space<vmem>>, vector<2x8x32xf32>
    tpu.vector_store %arg9[%c0_39, %c0_40, %c0_41], %157 {strides = array<i32>} : memref<2x8x32xf32, #tpu.memory_space<vmem>>, vector<2x8x32xf32>,
    return
  }
  func.func @transform_0(%arg0: i32, %arg1: i32) -> (i32, i32, i32) {
    %c0_i32 = arith.constant 0 : i32
    %c0_i32_0 = arith.constant 0 : i32
    %c0_i32_1 = arith.constant 0 : i32
    return %arg0, %c0_i32, %c0_i32_0 : i32, i32, i32
  }
  func.func @transform_1(%arg0: i32, %arg1: i32) -> (i32, i32, i32) {
    %c0_i32 = arith.constant 0 : i32
    %c0_i32_0 = arith.constant 0 : i32
    %c0_i32_1 = arith.constant 0 : i32
    return %arg0, %c0_i32, %c0_i32_0 : i32, i32, i32
  }
  func.func @transform_2(%arg0: i32, %arg1: i32) -> (i32, i32, i32) {
    %c0_i32 = arith.constant 0 : i32
    %c0_i32_0 = arith.constant 0 : i32
    %c0_i32_1 = arith.constant 0 : i32
    return %arg1, %c0_i32, %c0_i32_0 : i32, i32, i32
  }
  func.func @transform_3(%arg0: i32, %arg1: i32) -> (i32, i32, i32) {
    %c0_i32 = arith.constant 0 : i32
    %c0_i32_0 = arith.constant 0 : i32
    %c0_i32_1 = arith.constant 0 : i32
    return %arg1, %c0_i32, %c0_i32_0 : i32, i32, i32
  }
  func.func @transform_4(%arg0: i32, %arg1: i32) -> (i32, i32, i32) {
    %c0_i32 = arith.constant 0 : i32
    %c0_i32_0 = arith.constant 0 : i32
    %c0_i32_1 = arith.constant 0 : i32
    return %arg1, %c0_i32, %c0_i32_0 : i32, i32, i32
  }
  func.func @transform_5(%arg0: i32, %arg1: i32) -> (i32, i32, i32) {
    %c0_i32 = arith.constant 0 : i32
    %c0_i32_0 = arith.constant 0 : i32
    %c0_i32_1 = arith.constant 0 : i32
    return %arg1, %c0_i32, %c0_i32_0 : i32, i32, i32
  }
  func.func @transform_6(%arg0: i32, %arg1: i32) -> (i32, i32, i32) {
    %c0_i32 = arith.constant 0 : i32
    %c0_i32_0 = arith.constant 0 : i32
    %c0_i32_1 = arith.constant 0 : i32
    return %arg1, %c0_i32, %c0_i32_0 : i32, i32, i32
  }
  func.func @transform_7(%arg0: i32, %arg1: i32) -> (i32, i32, i32) {
    %c0_i32 = arith.constant 0 : i32
    %c0_i32_0 = arith.constant 0 : i32
    %c0_i32_1 = arith.constant 0 : i32
    return %arg0, %c0_i32, %c0_i32_0 : i32, i32, i32
  }
}

</mosaic_0001>

<llo_original>
// kernel: tpu_custom_call.1
$region0: #{tpu_custom_call.1}
  #allocation0 [shape = 'u32[]', space=smem, size = 0x4, offset = 0x4, fixed_abs, tag = 'smem constant byte address 0x4 - core index']
  #allocation1 [shape = 'u32[144,128]{1,0:T(1,128)}', space=vmem, size = 0x12000, scoped, tag = 'internal scratch']
  %s0 = inlined_call_operand.hbm [shape: f32[2,8,32], index: 0, kind: input, shape index: {}]
  %s1 = inlined_call_operand.hbm [shape: f32[2,1,8], index: 1, kind: input, shape index: {}]
  %s2 = inlined_call_operand.vmem [shape: bf16[2,32,96], index: 2, kind: input, shape index: {}]
  %s3 = inlined_call_operand.vmem [shape: bf16[2,32,32], index: 3, kind: input, shape index: {}]
  %s4 = inlined_call_operand.vmem [shape: bf16[2,32,64], index: 4, kind: input, shape index: {}]
  %s5 = inlined_call_operand.vmem [shape: bf16[2,64,32], index: 5, kind: input, shape index: {}]
  %s6 = inlined_call_operand.hbm [shape: f32[2,8,128], index: 6, kind: input, shape index: {}]
  %s7 = inlined_call_operand.hbm [shape: f32[2,8,32], index: 7, kind: output, shape index: {}]
  %s8 = sld [smem:[#allocation0]]
  $region77: #{tpu_custom_call.1} parent=0
    _
  %s10 = ssub.s32 1, %s8
  %s11 = scalar_select 0, %s10, %s8
  $region1: #{tpu_custom_call.1} parent=0
    #allocation2 [shape = 'u8[8192]{0}', space=vmem, size = 0x2000, scoped, tag = 'input window, operand 0, single buffered']
    #allocation3 [shape = 's32[2]{0}', space=sflag, size = 0x8, scoped, tag = 'scoped memory for tpu_custom_call.1']
    #allocation4 [shape = 's32[2]{0}', space=sflag, size = 0x8, scoped, tag = 'scoped memory for tpu_custom_call.1']
    #allocation5 [shape = 'u8[1024]{0}', space=vmem, size = 0x400, scoped, tag = 'input window, operand 1, single buffered']
    #allocation6 [shape = 's32[1]{0}', space=sflag, size = 0x4, scoped, tag = 'scoped memory for tpu_custom_call.1']
    #allocation7 [shape = 'u8[8192]{0}', space=vmem, size = 0x2000, scoped, tag = 'input window, operand 6']
    #allocation8 [shape = 'u8[8192]{0}', space=vmem, size = 0x2000, scoped, tag = 'output window, operand 0, single buffered']
    %12 = vsyncpa [#allocation3], 0
    %13 = vsyncpa [#allocation6], 0
    %14 = vsyncpa [#allocation4], 0
    loop: start=0, step=1, limit=4
    $region2: #{tpu_custom_call.1} parent=1 // loop_pre_header
      _
    $region3: #{tpu_custom_call.1} parent=1 // loop_header
      %s16 = sphi 0, %s20
      %p17 = scmp.ge.s32.totalorder %s16, 4
      %s23 = sphi 0, %s35
      %s24 = sphi 0, %s31
      %s25 = sphi 0, %s23
      %s26 = sphi 0, %s24
      %s27 = sphi 0, %s25
      %s28 = sphi 0, %s26
      %s38 = sphi 0, %s40
      %s41 = sphi 0, %s38
      %s42 = sphi 0, %s41
      %s58 = sphi 0, %s42
      %s64 = sphi 0, %s66
      %s67 = sphi 0, %s64
      %s68 = sphi 0, %s67
      %s84 = sphi 0, %s68
      %s90 = sphi 0, %s92
      %s93 = sphi 0, %s90
      %s94 = sphi 0, %s93
      %s110 = sphi 0, %s94
      %s116 = sphi 0, %s118
      %s119 = sphi 0, %s116
      %s120 = sphi 0, %s119
      %s136 = sphi 0, %s120
      %s142 = sphi 0, %s144
      %s145 = sphi 0, %s142
      %s146 = sphi 0, %s145
      %s162 = sphi 0, %s146
      %s168 = sphi 0, %s170
      %s171 = sphi 0, %s168
      %s172 = sphi 0, %s171
      %s188 = sphi 0, %s172
      %s194 = sphi 0, %s196
      %s197 = sphi 0, %s194
      %s198 = sphi 0, %s197
      %s214 = sphi 0, %s198
      %s220 = sphi 0, %s222
      %s223 = sphi 0, %s220
      %s224 = sphi 0, %s223
      %s240 = sphi 0, %s224
    $region4: #{tpu_custom_call.1} parent=1 // loop_header_branch
      %19 = sbr.rel (%p17) target = $region8
    $region5: #{tpu_custom_call.1} parent=1 // loop_body
      %s21 = ssub.s32 %s16, 1
      %s22 = ssub.s32 %s16, 2
      %s29 = sadd.s32 1, %s24
      %p30 = scmp.ge.s32.totalorder %s29, 2
      %s31 = scalar_select %p30, 0, %s29
      %s32 = sadd.s32 1, %s23
      %s33 = scalar_select %p30, %s32, %s23
      %p34 = scmp.ge.s32.totalorder %s33, 1
      %s35 = scalar_select %p34, 0, %s33
      %s36 = ssub.s32 %s23, %s35
      %p37 = scmp.eq.s32.totalorder %s36, 0
      %s39 = sadd.s32 %s38, 1
      %s40 = scalar_select %p37, %s38, %s39
      %p43 = pneg %p37
      %p44 = scmp.eq.s32.totalorder %s16, 1
      %p45 = por %p43, %p44
      %p46 = scmp.ne.s32.totalorder %s38, %s41
      %p47 = scmp.eq.s32.totalorder %s16, 0
      %p48 = por %p46, %p47
      %p49 = scmp.ne.s32.totalorder %s38, %s41
      %p50 = scmp.eq.s32.totalorder %s21, 1
      %p51 = por %p49, %p50
      %p52 = scmp.ne.s32.totalorder %s41, %s42
      %p53 = scmp.eq.s32.totalorder %s21, 0
      %p54 = por %p52, %p53
      %p55 = scmp.ne.s32.totalorder %s41, %s42
      %p56 = scmp.eq.s32.totalorder %s22, 1
      %p57 = por %p55, %p56
      %p59 = scmp.ne.s32.totalorder %s42, %s58
      %p60 = scmp.eq.s32.totalorder %s22, 0
      %p61 = por %p59, %p60
      %s62 = ssub.s32 %s23, %s35
      %p63 = scmp.eq.s32.totalorder %s62, 0
      %s65 = sadd.s32 %s64, 1
      %s66 = scalar_select %p63, %s64, %s65
      %p69 = pneg %p63
      %p70 = scmp.eq.s32.totalorder %s16, 1
      %p71 = por %p69, %p70
      %p72 = scmp.ne.s32.totalorder %s64, %s67
      %p73 = scmp.eq.s32.totalorder %s16, 0
      %p74 = por %p72, %p73
      %p75 = scmp.ne.s32.totalorder %s64, %s67
      %p76 = scmp.eq.s32.totalorder %s21, 1
      %p77 = por %p75, %p76
      %p78 = scmp.ne.s32.totalorder %s67, %s68
      %p79 = scmp.eq.s32.totalorder %s21, 0
      %p80 = por %p78, %p79
      %p81 = scmp.ne.s32.totalorder %s67, %s68
      %p82 = scmp.eq.s32.totalorder %s22, 1
      %p83 = por %p81, %p82
      %p85 = scmp.ne.s32.totalorder %s68, %s84
      %p86 = scmp.eq.s32.totalorder %s22, 0
      %p87 = por %p85, %p86
      %s88 = ssub.s32 %s24, %s31
      %p89 = scmp.eq.s32.totalorder %s88, 0
      %s91 = sadd.s32 %s90, 1
      %s92 = scalar_select %p89, %s90, %s91
      %p95 = pneg %p89
      %p96 = scmp.eq.s32.totalorder %s16, 1
      %p97 = por %p95, %p96
      %p98 = scmp.ne.s32.totalorder %s90, %s93
      %p99 = scmp.eq.s32.totalorder %s16, 0
      %p100 = por %p98, %p99
      %p101 = scmp.ne.s32.totalorder %s90, %s93
      %p102 = scmp.eq.s32.totalorder %s21, 1
      %p103 = por %p101, %p102
      %p104 = scmp.ne.s32.totalorder %s93, %s94
      %p105 = scmp.eq.s32.totalorder %s21, 0
      %p106 = por %p104, %p105
      %p107 = scmp.ne.s32.totalorder %s93, %s94
      %p108 = scmp.eq.s32.totalorder %s22, 1
      %p109 = por %p107, %p108
      %p111 = scmp.ne.s32.totalorder %s94, %s110
      %p112 = scmp.eq.s32.totalorder %s22, 0
      %p113 = por %p111, %p112
      %s114 = ssub.s32 %s24, %s31
      %p115 = scmp.eq.s32.totalorder %s114, 0
      %s117 = sadd.s32 %s116, 1
      %s118 = scalar_select %p115, %s116, %s117
      %p121 = pneg %p115
      %p122 = scmp.eq.s32.totalorder %s16, 1
      %p123 = por %p121, %p122
      %p124 = scmp.ne.s32.totalorder %s116, %s119
      %p125 = scmp.eq.s32.totalorder %s16, 0
      %p126 = por %p124, %p125
      %p127 = scmp.ne.s32.totalorder %s116, %s119
      %p128 = scmp.eq.s32.totalorder %s21, 1
      %p129 = por %p127, %p128
      %p130 = scmp.ne.s32.totalorder %s119, %s120
      %p131 = scmp.eq.s32.totalorder %s21, 0
      %p132 = por %p130, %p131
      %p133 = scmp.ne.s32.totalorder %s119, %s120
      %p134 = scmp.eq.s32.totalorder %s22, 1
      %p135 = por %p133, %p134
      %p137 = scmp.ne.s32.totalorder %s120, %s136
      %p138 = scmp.eq.s32.totalorder %s22, 0
      %p139 = por %p137, %p138
      %s140 = ssub.s32 %s24, %s31
      %p141 = scmp.eq.s32.totalorder %s140, 0
      %s143 = sadd.s32 %s142, 1
      %s144 = scalar_select %p141, %s142, %s143
      %p147 = pneg %p141
      %p148 = scmp.eq.s32.totalorder %s16, 1
      %p149 = por %p147, %p148
      %p150 = scmp.ne.s32.totalorder %s142, %s145
      %p151 = scmp.eq.s32.totalorder %s16, 0
      %p152 = por %p150, %p151
      %p153 = scmp.ne.s32.totalorder %s142, %s145
      %p154 = scmp.eq.s32.totalorder %s21, 1
      %p155 = por %p153, %p154
      %p156 = scmp.ne.s32.totalorder %s145, %s146
      %p157 = scmp.eq.s32.totalorder %s21, 0
      %p158 = por %p156, %p157
      %p159 = scmp.ne.s32.totalorder %s145, %s146
      %p160 = scmp.eq.s32.totalorder %s22, 1
      %p161 = por %p159, %p160
      %p163 = scmp.ne.s32.totalorder %s146, %s162
      %p164 = scmp.eq.s32.totalorder %s22, 0
      %p165 = por %p163, %p164
      %s166 = ssub.s32 %s24, %s31
      %p167 = scmp.eq.s32.totalorder %s166, 0
      %s169 = sadd.s32 %s168, 1
      %s170 = scalar_select %p167, %s168, %s169
      %p173 = pneg %p167
      %p174 = scmp.eq.s32.totalorder %s16, 1
      %p175 = por %p173, %p174
      %p176 = scmp.ne.s32.totalorder %s168, %s171
      %p177 = scmp.eq.s32.totalorder %s16, 0
      %p178 = por %p176, %p177
      %p179 = scmp.ne.s32.totalorder %s168, %s171
      %p180 = scmp.eq.s32.totalorder %s21, 1
      %p181 = por %p179, %p180
      %p182 = scmp.ne.s32.totalorder %s171, %s172
      %p183 = scmp.eq.s32.totalorder %s21, 0
      %p184 = por %p182, %p183
      %p185 = scmp.ne.s32.totalorder %s171, %s172
      %p186 = scmp.eq.s32.totalorder %s22, 1
      %p187 = por %p185, %p186
      %p189 = scmp.ne.s32.totalorder %s172, %s188
      %p190 = scmp.eq.s32.totalorder %s22, 0
      %p191 = por %p189, %p190
      %s192 = ssub.s32 %s24, %s31
      %p193 = scmp.eq.s32.totalorder %s192, 0
      %s195 = sadd.s32 %s194, 1
      %s196 = scalar_select %p193, %s194, %s195
      %p199 = pneg %p193
      %p200 = scmp.eq.s32.totalorder %s16, 1
      %p201 = por %p199, %p200
      %p202 = scmp.ne.s32.totalorder %s194, %s197
      %p203 = scmp.eq.s32.totalorder %s16, 0
      %p204 = por %p202, %p203
      %p205 = scmp.ne.s32.totalorder %s194, %s197
      %p206 = scmp.eq.s32.totalorder %s21, 1
      %p207 = por %p205, %p206
      %p208 = scmp.ne.s32.totalorder %s197, %s198
      %p209 = scmp.eq.s32.totalorder %s21, 0
      %p210 = por %p208, %p209
      %p211 = scmp.ne.s32.totalorder %s197, %s198
      %p212 = scmp.eq.s32.totalorder %s22, 1
      %p213 = por %p211, %p212
      %p215 = scmp.ne.s32.totalorder %s198, %s214
      %p216 = scmp.eq.s32.totalorder %s22, 0
      %p217 = por %p215, %p216
      %s218 = ssub.s32 %s23, %s35
      %p219 = scmp.eq.s32.totalorder %s218, 0
      %s221 = sadd.s32 %s220, 1
      %s222 = scalar_select %p219, %s220, %s221
      %p225 = pneg %p219
      %p226 = scmp.eq.s32.totalorder %s16, 1
      %p227 = por %p225, %p226
      %p228 = scmp.ne.s32.totalorder %s220, %s223
      %p229 = scmp.eq.s32.totalorder %s16, 0
      %p230 = por %p228, %p229
      %p231 = scmp.ne.s32.totalorder %s220, %s223
      %p232 = scmp.eq.s32.totalorder %s21, 1
      %p233 = por %p231, %p232
      %p234 = scmp.ne.s32.totalorder %s223, %s224
      %p235 = scmp.eq.s32.totalorder %s21, 0
      %p236 = por %p234, %p235
      %p237 = scmp.ne.s32.totalorder %s223, %s224
      %p238 = scmp.eq.s32.totalorder %s22, 1
      %p239 = por %p237, %p238
      %p241 = scmp.ne.s32.totalorder %s224, %s240
      %p242 = scmp.eq.s32.totalorder %s22, 0
      %p243 = por %p241, %p242
      %p244 = scmp.le.s32.totalorder 1, %s16
      %p245 = scmp.lt.s32.totalorder %s16, 3
      %p246 = pnand %p244, %p245
      %p247 = pneg %p246
      // Predicated region
      $region9: #{tpu_custom_call.1} parent=5 // pred_check
        _
      $region10: #{tpu_custom_call.1} parent=5 // pred_check_branch
        %249 = sbr.rel (%p246) target = $region12
      $region11: #{tpu_custom_call.1} parent=5 // pred_region
        %s250 = ssub.s32 %s16, 1
        // Predicated region
        $region13: #{tpu_custom_call.1} parent=11 // pred_check
          %p251 = pneg %p54
        $region14: #{tpu_custom_call.1} parent=11 // pred_check_branch
          %253 = sbr.rel (%p251) target = $region16
        $region15: #{tpu_custom_call.1} parent=11 // pred_region
          %s254 = smul.u32 2, %s25
          %s256 = ssub.s32 256, 256
          %257 = vsyncadd [#allocation3], %s256
          %s258 = smul.addr %s254, 128
          %s259 = scalar_lea.hbm %s0, %s258
          %s260 = sshll.u32 [#allocation2], 4
          %s261 = int_to_ptr.vmem [resolvable:$true] %s260
          %266 = dma.hbm_to_vmem [thread:$0]  %s259, 256, %s261, [#allocation3], 128, 128, 8
        $region16: #{tpu_custom_call.1} parent=11 // pred_fallthru
          _
        // Predicated region
        $region17: #{tpu_custom_call.1} parent=11 // pred_check
          %p267 = pneg %p80
        $region18: #{tpu_custom_call.1} parent=11 // pred_check_branch
          %269 = sbr.rel (%p267) target = $region20
        $region19: #{tpu_custom_call.1} parent=11 // pred_region
          %s270 = smul.u32 2, %s25
          %s272 = ssub.s32 32, 32
          %273 = vsyncadd [#allocation6], %s272
          %s274 = smul.addr %s270, 16
          %s275 = scalar_lea.hbm %s1, %s274
          %s276 = sshll.u32 [#allocation5], 4
          %s277 = int_to_ptr.vmem [resolvable:$true] %s276
          %282 = dma.hbm_to_vmem [thread:$0]  %s275, 32, %s277, [#allocation6], 16, 16, 1
        $region20: #{tpu_custom_call.1} parent=11 // pred_fallthru
          _
      $region12: #{tpu_custom_call.1} parent=5 // pred_fallthru
        _
      %p283 = scmp.lt.s32.totalorder %s16, 2
      // Predicated region
      $region21: #{tpu_custom_call.1} parent=5 // pred_check
        %p284 = pneg %p283
      $region22: #{tpu_custom_call.1} parent=5 // pred_check_branch
        %286 = sbr.rel (%p284) target = $region24
      $region23: #{tpu_custom_call.1} parent=5 // pred_region
        // Predicated region
        $region25: #{tpu_custom_call.1} parent=23 // pred_check
          %p287 = pneg %p100
        $region26: #{tpu_custom_call.1} parent=23 // pred_check_branch
          %289 = sbr.rel (%p287) target = $region28
        $region27: #{tpu_custom_call.1} parent=23 // pred_region
          %p290 = scmp.lt.s32.totalorder %s24, 1
          %s291 = scalar_select %p290, %s24, 1
          %s292 = smul.addr %s291, 4
          %s293 = smul.addr %s292, 4
          %s294 = scalar_lea.vmem %s2, %s293
        $region28: #{tpu_custom_call.1} parent=23 // pred_fallthru
          _
        // Predicated region
        $region29: #{tpu_custom_call.1} parent=23 // pred_check
          %p295 = pneg %p126
        $region30: #{tpu_custom_call.1} parent=23 // pred_check_branch
          %297 = sbr.rel (%p295) target = $region32
        $region31: #{tpu_custom_call.1} parent=23 // pred_region
          %p298 = scmp.lt.s32.totalorder %s24, 1
          %s299 = scalar_select %p298, %s24, 1
          %s300 = smul.addr %s299, 4
          %s301 = smul.addr %s300, 4
          %s302 = scalar_lea.vmem %s3, %s301
        $region32: #{tpu_custom_call.1} parent=23 // pred_fallthru
          _
        // Predicated region
        $region33: #{tpu_custom_call.1} parent=23 // pred_check
          %p303 = pneg %p152
        $region34: #{tpu_custom_call.1} parent=23 // pred_check_branch
          %305 = sbr.rel (%p303) target = $region36
        $region35: #{tpu_custom_call.1} parent=23 // pred_region
          %p306 = scmp.lt.s32.totalorder %s24, 1
          %s307 = scalar_select %p306, %s24, 1
          %s308 = smul.addr %s307, 4
          %s309 = smul.addr %s308, 4
          %s310 = scalar_lea.vmem %s4, %s309
        $region36: #{tpu_custom_call.1} parent=23 // pred_fallthru
          _
        // Predicated region
        $region37: #{tpu_custom_call.1} parent=23 // pred_check
          %p311 = pneg %p178
        $region38: #{tpu_custom_call.1} parent=23 // pred_check_branch
          %313 = sbr.rel (%p311) target = $region40
        $region39: #{tpu_custom_call.1} parent=23 // pred_region
          %p314 = scmp.lt.s32.totalorder %s24, 1
          %s315 = scalar_select %p314, %s24, 1
          %s316 = smul.addr %s315, 8
          %s317 = smul.addr %s316, 4
          %s318 = scalar_lea.vmem %s5, %s317
        $region40: #{tpu_custom_call.1} parent=23 // pred_fallthru
          _
        // Predicated region
        $region41: #{tpu_custom_call.1} parent=23 // pred_check
          %p319 = pneg %p204
        $region42: #{tpu_custom_call.1} parent=23 // pred_check_branch
          %321 = sbr.rel (%p319) target = $region44
        $region43: #{tpu_custom_call.1} parent=23 // pred_region
          %s322 = sand.u32 %s16, 1
          %s323 = scalar_lea.sflag [#allocation3], %s322
          %s324 = sand.u32 %s194, 1
          %s325 = smul.addr %s324, 8
          %s326 = scalar_lea.vmem [#allocation7], %s325
          %s328 = ssub.s32 128, 128
          %329 = vsyncadd %s323, %s328
          %s330 = smul.addr %s24, 128
          %s331 = scalar_lea.hbm %s6, %s330
          %s333 = sshll.u32 %s326, 4
          %s334 = int_to_ptr.vmem [resolvable:$true] %s333
          %336 = dma.hbm_to_vmem [thread:$0]  %s331, 128, %s334, %s323
        $region44: #{tpu_custom_call.1} parent=23 // pred_fallthru
          _
      $region24: #{tpu_custom_call.1} parent=5 // pred_fallthru
        _
      %p337 = scmp.le.s32.totalorder 1, %s16
      %p338 = scmp.lt.s32.totalorder %s16, 3
      %p339 = pnand %p337, %p338
      %p340 = pneg %p339
      // Predicated region
      $region45: #{tpu_custom_call.1} parent=5 // pred_check
        _
      $region46: #{tpu_custom_call.1} parent=5 // pred_check_branch
        %342 = sbr.rel (%p339) target = $region48
      $region47: #{tpu_custom_call.1} parent=5 // pred_region
        %s343 = ssub.s32 %s16, 1
        // Predicated region
        $region49: #{tpu_custom_call.1} parent=47 // pred_check
          %p344 = pneg %p54
        $region50: #{tpu_custom_call.1} parent=47 // pred_check_branch
          %346 = sbr.rel (%p344) target = $region52
        $region51: #{tpu_custom_call.1} parent=47 // pred_region
          %347 = dma.done [#allocation3], 256
        $region52: #{tpu_custom_call.1} parent=47 // pred_fallthru
          _
        // Predicated region
        $region53: #{tpu_custom_call.1} parent=47 // pred_check
          %p348 = pneg %p80
        $region54: #{tpu_custom_call.1} parent=47 // pred_check_branch
          %350 = sbr.rel (%p348) target = $region56
        $region55: #{tpu_custom_call.1} parent=47 // pred_region
          %351 = dma.done [#allocation6], 32
        $region56: #{tpu_custom_call.1} parent=47 // pred_fallthru
          _
        %s352 = sand.u32 %s21, 1
        %s353 = scalar_lea.sflag [#allocation3], %s352
        %s354 = sand.u32 %s197, 1
        %s355 = smul.addr %s354, 8
        %s356 = scalar_lea.vmem [#allocation7], %s355
        // Predicated region
        $region57: #{tpu_custom_call.1} parent=47 // pred_check
          %p357 = pneg %p210
        $region58: #{tpu_custom_call.1} parent=47 // pred_check_branch
          %359 = sbr.rel (%p357) target = $region60
        $region59: #{tpu_custom_call.1} parent=47 // pred_region
          %360 = dma.done %s353, 128
        $region60: #{tpu_custom_call.1} parent=47 // pred_fallthru
          _
        %p361 = pneg %p54
        %p362 = pneg %p51
        %p363 = pneg %p80
        %p364 = pneg %p77
        %p365 = scmp.lt.s32.totalorder %s26, 1
        %s366 = scalar_select %p365, %s26, 1
        %s367 = smul.addr %s366, 4
        %s368 = smul.addr %s367, 4
        %s369 = scalar_lea.vmem %s2, %s368
        %p370 = pneg %p106
        %p371 = pneg %p103
        %p372 = scmp.lt.s32.totalorder %s26, 1
        %s373 = scalar_select %p372, %s26, 1
        %s374 = smul.addr %s373, 4
        %s375 = smul.addr %s374, 4
        %s376 = scalar_lea.vmem %s3, %s375
        %p377 = pneg %p132
        %p378 = pneg %p129
        %p379 = scmp.lt.s32.totalorder %s26, 1
        %s380 = scalar_select %p379, %s26, 1
        %s381 = smul.addr %s380, 4
        %s382 = smul.addr %s381, 4
        %s383 = scalar_lea.vmem %s4, %s382
        %p384 = pneg %p158
        %p385 = pneg %p155
        %p386 = scmp.lt.s32.totalorder %s26, 1
        %s387 = scalar_select %p386, %s26, 1
        %s388 = smul.addr %s387, 8
        %s389 = smul.addr %s388, 4
        %s390 = scalar_lea.vmem %s5, %s389
        %p391 = pneg %p184
        %p392 = pneg %p181
        %s393 = sand.u32 %s21, 1
        %s394 = scalar_lea.sflag [#allocation3], %s393
        %s395 = sand.u32 %s197, 1
        %s396 = smul.addr %s395, 8
        %s397 = scalar_lea.vmem [#allocation7], %s396
        %p398 = pneg %p210
        %p399 = pneg %p207
        %p400 = pneg %p236
        %p401 = pneg %p233
        %s402 = smul.u32 2, %s25
        %s403 = smul.u32 2, %s25
        %p404 = scmp.lt.s32.totalorder %s26, 1
        %s405 = scalar_select %p404, %s26, 1
        %s406 = smul.addr %s405, 4
        %s407 = smul.addr %s406, 4
        %s408 = scalar_lea.vmem %s2, %s407
        %p409 = scmp.lt.s32.totalorder %s26, 1
        %s410 = scalar_select %p409, %s26, 1
        %s411 = smul.addr %s410, 4
        %s412 = smul.addr %s411, 4
        %s413 = scalar_lea.vmem %s3, %s412
        %p414 = scmp.lt.s32.totalorder %s26, 1
        %s415 = scalar_select %p414, %s26, 1
        %s416 = smul.addr %s415, 4
        %s417 = smul.addr %s416, 4
        %s418 = scalar_lea.vmem %s4, %s417
        %p419 = scmp.lt.s32.totalorder %s26, 1
        %s420 = scalar_select %p419, %s26, 1
        %s421 = smul.addr %s420, 8
        %s422 = smul.addr %s421, 4
        %s423 = scalar_lea.vmem %s5, %s422
        %s424 = smul.u32 2, %s25
        %p426 = scmp.eq.s32.totalorder %s26, 0
        // Predicated region
        $region61: #{tpu_custom_call.1} parent=47 // pred_check
          %p427 = pneg %p426
        $region62: #{tpu_custom_call.1} parent=47 // pred_check_branch
          %429 = sbr.rel (%p427) target = $region64
        $region63: #{tpu_custom_call.1} parent=47 // pred_region
          %v430 = vld [vmem:[#allocation2] sm:$0xff]
          %v431 = vld [vmem:[#allocation2 + $0x8] sm:$0xff]
          %vm432 = vcmask 261120
          %433 = vst.msk [vmem:[#allocation8] sm:$0xff] %vm432, %v430
          %434 = vst.msk [vmem:[#allocation8 + $0x8] sm:$0xff] %vm432, %v431
        $region64: #{tpu_custom_call.1} parent=47 // pred_fallthru
          _
        %v435 = vld [vmem:[%s356] sm:$0xff]
        %v436 = vld [vmem:[#allocation8] sm:$0xff]
        %v437 = vld [vmem:[#allocation8 + $0x8] sm:$0xff]
        %v438 = vpack.c.bf16 %v437, %v436
        %v439 = vld [vmem:[%s408] sm:$0xf]
        %v440 = vld [vmem:[%s408 + $0x4] sm:$0xf]
        %v441 = vld [vmem:[%s408 + $0x8] sm:$0xf]
        %v442 = vld [vmem:[%s408 + $0xc] sm:$0xf]
        %v443 = vlaneseq
        %v444 = vshrl.u32 %v443, 7
        %v445 = vsub.s32 0, %v444
        %v446 = vrot.slane %v435, %v445
        %v451 = vunpack.c.l.b16 %v439
        %v452 = vunpack.c.l.b16 %v440
        %v453 = vunpack.c.l.b16 %v441
        %v454 = vunpack.c.l.b16 %v442
        %v455 = vpack.c.b16 %v452, %v451
        %v456 = vpack.c.b16 %v454, %v453
        %vm459 = vcmask 261120
        %v461 = vsel %vm459, %v438, 0
        %463 = vmatprep.subr.bf16.mxu0 0
        %464 = vmatpush1.bf16.msra.mxu0 0
        %465 = vmatprep.subr.bf16.mxu0 0
        %466 = vmatpush1.bf16.msra.mxu0 0
        %467 = vmatprep.subr.bf16.mxu0 0
        %468 = vmatpush1.bf16.msra.mxu0 0
        %469 = vmatprep.subr.bf16.mxu0 0
        %470 = vmatpush1.bf16.msra.mxu0 0
        %471 = vmatprep.subr.bf16.mxu0 0
        %472 = vmatpush1.bf16.msra.mxu0 0
        %473 = vmatprep.subr.bf16.mxu0 0
        %474 = vmatpush1.bf16.msra.mxu0 0
        %475 = vmatprep.subr.bf16.mxu0 0
        %476 = vmatpush1.bf16.msra.mxu0 %v456
        %477 = vmatprep.subr.bf16.mxu0 0
        %478 = vmatpush1.bf16.msra.mxu0 %v455
        %479 = vmatprep.subr.bf16.mxu0 0
        %480 = vmatpush2.bf16.msra.mxu0 0
        %481 = vmatprep.subr.bf16.mxu0 0
        %482 = vmatpush2.bf16.msra.mxu0 0
        %483 = vmatprep.subr.bf16.mxu0 0
        %484 = vmatpush2.bf16.msra.mxu0 0
        %485 = vmatprep.subr.bf16.mxu0 0
        %486 = vmatpush2.bf16.msra.mxu0 0
        %487 = vmatprep.subr.bf16.mxu0 0
        %488 = vmatpush2.bf16.msra.mxu0 0
        %489 = vmatprep.subr.bf16.mxu0 0
        %490 = vmatpush2.bf16.msra.mxu0 0
        %491 = vmatprep.subr.bf16.mxu0 0
        %492 = vmatpush2.bf16.msra.mxu0 0
        %493 = vmatprep.subr.bf16.mxu0 0
        %494 = vmatpush2.bf16.msra.mxu0 0
        %495 = vmatprep.mubr.bf16.mxu0 0
        %496 = vmatmul.mubr.bf16.gmra.mxu0 %v461
        %v497 = vpop.f32.mrf.mxu0
        %v498 = vadd.f32 %v446, %v497
        %v499 = vpop.f32.mrf.mxu0
        %v500 = vpop.f32.mrf.mxu0
        %v501 = vadd.f32 %v446, %v500
        %v502 = vpop.f32.mrf.mxu0
        %503 = vdwg.mxu0
        %v504 = vpack.c.bf16 %v498, %v498
        %v505 = vpack.c.bf16 %v501, %v501
        %508 = vrot.lane.b32.xlu0 %v504, 120
        %v509 = vpop.permute.xlu0 %508
        %510 = vrot.lane.b32.xlu0 %v505, 120
        %v511 = vpop.permute.xlu0 %510
        %512 = vrot.lane.b32.xlu0 %v504, 112
        %v513 = vpop.permute.xlu0 %512
        %514 = vrot.lane.b32.xlu0 %v505, 112
        %v515 = vpop.permute.xlu0 %514
        %516 = vrot.lane.b32.xlu0 %v504, 104
        %v517 = vpop.permute.xlu0 %516
        %518 = vrot.lane.b32.xlu0 %v505, 104
        %v519 = vpop.permute.xlu0 %518
        %v520 = vld [vmem:[#allocation5] sm:$0x1]
        %v521 = vld [vmem:[#allocation5 + $0x1] sm:$0x1]
        %v524 = vlaneseq
        %v525 = vshrl.u32 %v524, 7
        %v526 = vsub.s32 0, %v525
        %v527 = vrot.slane %v520, %v526
        %v528 = vlaneseq
        %v529 = vshrl.u32 %v528, 7
        %v530 = vsub.s32 0, %v529
        %v531 = vrot.slane %v521, %v530
        %534 = vrot.lane.b32.xlu0 %v504, 96
        %v535 = vpop.permute.xlu0 %534
        %vm536 = vcmask 64512
        %v538 = vsel %vm536, %v504, 0
        %v541 = vsel %vm536, %v535, 0
        %543 = vmatprep.subr.bf16.mxu0 0
        %544 = vmatpush1.bf16.xpose.msra.mxu0 0
        %545 = vmatprep.subr.bf16.mxu0 0
        %546 = vmatpush1.bf16.xpose.msra.mxu0 0
        %547 = vmatprep.subr.bf16.mxu0 0
        %548 = vmatpush1.bf16.xpose.msra.mxu0 0
        %549 = vmatprep.subr.bf16.mxu0 0
        %550 = vmatpush1.bf16.xpose.msra.mxu0 0
        %551 = vmatprep.subr.bf16.mxu0 0
        %552 = vmatpush1.bf16.xpose.msra.mxu0 0
        %553 = vmatprep.subr.bf16.mxu0 0
        %554 = vmatpush1.bf16.xpose.msra.mxu0 0
        %555 = vmatprep.subr.bf16.mxu0 0
        %556 = vmatpush1.bf16.xpose.msra.mxu0 0
        %557 = vmatprep.subr.bf16.mxu0 0
        %558 = vmatpush1.bf16.xpose.msra.mxu0 %v541
        %559 = vmatprep.subr.bf16.mxu0 0
        %560 = vmatpush2.bf16.xpose.msra.mxu0 0
        %561 = vmatprep.subr.bf16.mxu0 0
        %562 = vmatpush2.bf16.xpose.msra.mxu0 0
        %563 = vmatprep.subr.bf16.mxu0 0
        %564 = vmatpush2.bf16.xpose.msra.mxu0 0
        %565 = vmatprep.subr.bf16.mxu0 0
        %566 = vmatpush2.bf16.xpose.msra.mxu0 0
        %567 = vmatprep.subr.bf16.mxu0 0
        %568 = vmatpush2.bf16.xpose.msra.mxu0 0
        %569 = vmatprep.subr.bf16.mxu0 0
        %570 = vmatpush2.bf16.xpose.msra.mxu0 0
        %571 = vmatprep.subr.bf16.mxu0 0
        %572 = vmatpush2.bf16.xpose.msra.mxu0 0
        %573 = vmatprep.subr.bf16.mxu0 0
        %574 = vmatpush2.bf16.xpose.msra.mxu0 0
        %575 = vmatprep.mubr.bf16.mxu0 0
        %576 = vmatmul.mubr.bf16.gmra.mxu0 %v538
        %v577 = vpop.f32.mrf.mxu0
        %v578 = vadd.f32 %v527, %v577
        %v579 = vpop.f32.mrf.mxu0
        %v580 = vpop.f32.mrf.mxu0
        %v581 = vpop.f32.mrf.mxu0
        %582 = vdwg.mxu0
        %583 = vrot.lane.b32.xlu0 %v505, 96
        %v584 = vpop.permute.xlu0 %583
        %v586 = vsel %vm536, %v505, 0
        %v589 = vsel %vm536, %v584, 0
        %591 = vmatprep.subr.bf16.mxu0 0
        %592 = vmatpush1.bf16.xpose.msra.mxu0 0
        %593 = vmatprep.subr.bf16.mxu0 0
        %594 = vmatpush1.bf16.xpose.msra.mxu0 0
        %595 = vmatprep.subr.bf16.mxu0 0
        %596 = vmatpush1.bf16.xpose.msra.mxu0 0
        %597 = vmatprep.subr.bf16.mxu0 0
        %598 = vmatpush1.bf16.xpose.msra.mxu0 0
        %599 = vmatprep.subr.bf16.mxu0 0
        %600 = vmatpush1.bf16.xpose.msra.mxu0 0
        %601 = vmatprep.subr.bf16.mxu0 0
        %602 = vmatpush1.bf16.xpose.msra.mxu0 0
        %603 = vmatprep.subr.bf16.mxu0 0
        %604 = vmatpush1.bf16.xpose.msra.mxu0 0
        %605 = vmatprep.subr.bf16.mxu0 0
        %606 = vmatpush1.bf16.xpose.msra.mxu0 %v589
        %607 = vmatprep.subr.bf16.mxu0 0
        %608 = vmatpush2.bf16.xpose.msra.mxu0 0
        %609 = vmatprep.subr.bf16.mxu0 0
        %610 = vmatpush2.bf16.xpose.msra.mxu0 0
        %611 = vmatprep.subr.bf16.mxu0 0
        %612 = vmatpush2.bf16.xpose.msra.mxu0 0
        %613 = vmatprep.subr.bf16.mxu0 0
        %614 = vmatpush2.bf16.xpose.msra.mxu0 0
        %615 = vmatprep.subr.bf16.mxu0 0
        %616 = vmatpush2.bf16.xpose.msra.mxu0 0
        %617 = vmatprep.subr.bf16.mxu0 0
        %618 = vmatpush2.bf16.xpose.msra.mxu0 0
        %619 = vmatprep.subr.bf16.mxu0 0
        %620 = vmatpush2.bf16.xpose.msra.mxu0 0
        %621 = vmatprep.subr.bf16.mxu0 0
        %622 = vmatpush2.bf16.xpose.msra.mxu0 0
        %623 = vmatprep.mubr.bf16.mxu0 0
        %624 = vmatmul.mubr.bf16.gmra.mxu0 %v586
        %v625 = vpop.f32.mrf.mxu0
        %v626 = vadd.f32 %v531, %v625
        %v627 = vpop.f32.mrf.mxu0
        %v628 = vpop.f32.mrf.mxu0
        %v629 = vpop.f32.mrf.mxu0
        %630 = vdwg.mxu0
        %631 = vrot.lane.b32.xlu0 %v509, 96
        %v632 = vpop.permute.xlu0 %631
        %v634 = vsel %vm536, %v509, 0
        %v637 = vsel %vm536, %v632, 0
        %639 = vmatprep.subr.bf16.mxu0 0
        %640 = vmatpush1.bf16.xpose.msra.mxu0 0
        %641 = vmatprep.subr.bf16.mxu0 0
        %642 = vmatpush1.bf16.xpose.msra.mxu0 0
        %643 = vmatprep.subr.bf16.mxu0 0
        %644 = vmatpush1.bf16.xpose.msra.mxu0 0
        %645 = vmatprep.subr.bf16.mxu0 0
        %646 = vmatpush1.bf16.xpose.msra.mxu0 0
        %647 = vmatprep.subr.bf16.mxu0 0
        %648 = vmatpush1.bf16.xpose.msra.mxu0 0
        %649 = vmatprep.subr.bf16.mxu0 0
        %650 = vmatpush1.bf16.xpose.msra.mxu0 0
        %651 = vmatprep.subr.bf16.mxu0 0
        %652 = vmatpush1.bf16.xpose.msra.mxu0 0
        %653 = vmatprep.subr.bf16.mxu0 0
        %654 = vmatpush1.bf16.xpose.msra.mxu0 %v637
        %655 = vmatprep.subr.bf16.mxu0 0
        %656 = vmatpush2.bf16.xpose.msra.mxu0 0
        %657 = vmatprep.subr.bf16.mxu0 0
        %658 = vmatpush2.bf16.xpose.msra.mxu0 0
        %659 = vmatprep.subr.bf16.mxu0 0
        %660 = vmatpush2.bf16.xpose.msra.mxu0 0
        %661 = vmatprep.subr.bf16.mxu0 0
        %662 = vmatpush2.bf16.xpose.msra.mxu0 0
        %663 = vmatprep.subr.bf16.mxu0 0
        %664 = vmatpush2.bf16.xpose.msra.mxu0 0
        %665 = vmatprep.subr.bf16.mxu0 0
        %666 = vmatpush2.bf16.xpose.msra.mxu0 0
        %667 = vmatprep.subr.bf16.mxu0 0
        %668 = vmatpush2.bf16.xpose.msra.mxu0 0
        %669 = vmatprep.subr.bf16.mxu0 0
        %670 = vmatpush2.bf16.xpose.msra.mxu0 0
        %671 = vmatprep.mubr.bf16.mxu0 0
        %672 = vmatmul.mubr.bf16.gmra.mxu0 %v634
        %v673 = vpop.f32.mrf.mxu0
        %v674 = vadd.f32 %v527, %v673
        %v675 = vpop.f32.mrf.mxu0
        %v676 = vpop.f32.mrf.mxu0
        %v677 = vpop.f32.mrf.mxu0
        %678 = vdwg.mxu0
        %679 = vrot.lane.b32.xlu0 %v511, 96
        %v680 = vpop.permute.xlu0 %679
        %v682 = vsel %vm536, %v511, 0
        %v685 = vsel %vm536, %v680, 0
        %687 = vmatprep.subr.bf16.mxu0 0
        %688 = vmatpush1.bf16.xpose.msra.mxu0 0
        %689 = vmatprep.subr.bf16.mxu0 0
        %690 = vmatpush1.bf16.xpose.msra.mxu0 0
        %691 = vmatprep.subr.bf16.mxu0 0
        %692 = vmatpush1.bf16.xpose.msra.mxu0 0
        %693 = vmatprep.subr.bf16.mxu0 0
        %694 = vmatpush1.bf16.xpose.msra.mxu0 0
        %695 = vmatprep.subr.bf16.mxu0 0
        %696 = vmatpush1.bf16.xpose.msra.mxu0 0
        %697 = vmatprep.subr.bf16.mxu0 0
        %698 = vmatpush1.bf16.xpose.msra.mxu0 0
        %699 = vmatprep.subr.bf16.mxu0 0
        %700 = vmatpush1.bf16.xpose.msra.mxu0 0
        %701 = vmatprep.subr.bf16.mxu0 0
        %702 = vmatpush1.bf16.xpose.msra.mxu0 %v685
        %703 = vmatprep.subr.bf16.mxu0 0
        %704 = vmatpush2.bf16.xpose.msra.mxu0 0
        %705 = vmatprep.subr.bf16.mxu0 0
        %706 = vmatpush2.bf16.xpose.msra.mxu0 0
        %707 = vmatprep.subr.bf16.mxu0 0
        %708 = vmatpush2.bf16.xpose.msra.mxu0 0
        %709 = vmatprep.subr.bf16.mxu0 0
        %710 = vmatpush2.bf16.xpose.msra.mxu0 0
        %711 = vmatprep.subr.bf16.mxu0 0
        %712 = vmatpush2.bf16.xpose.msra.mxu0 0
        %713 = vmatprep.subr.bf16.mxu0 0
        %714 = vmatpush2.bf16.xpose.msra.mxu0 0
        %715 = vmatprep.subr.bf16.mxu0 0
        %716 = vmatpush2.bf16.xpose.msra.mxu0 0
        %717 = vmatprep.subr.bf16.mxu0 0
        %718 = vmatpush2.bf16.xpose.msra.mxu0 0
        %719 = vmatprep.mubr.bf16.mxu0 0
        %720 = vmatmul.mubr.bf16.gmra.mxu0 %v682
        %v721 = vpop.f32.mrf.mxu0
        %v722 = vadd.f32 %v531, %v721
        %v723 = vpop.f32.mrf.mxu0
        %v724 = vpop.f32.mrf.mxu0
        %v725 = vpop.f32.mrf.mxu0
        %726 = vdwg.mxu0
        %727 = vrot.lane.b32.xlu0 %v513, 96
        %v728 = vpop.permute.xlu0 %727
        %v730 = vsel %vm536, %v513, 0
        %v733 = vsel %vm536, %v728, 0
        %735 = vmatprep.subr.bf16.mxu0 0
        %736 = vmatpush1.bf16.xpose.msra.mxu0 0
        %737 = vmatprep.subr.bf16.mxu0 0
        %738 = vmatpush1.bf16.xpose.msra.mxu0 0
        %739 = vmatprep.subr.bf16.mxu0 0
        %740 = vmatpush1.bf16.xpose.msra.mxu0 0
        %741 = vmatprep.subr.bf16.mxu0 0
        %742 = vmatpush1.bf16.xpose.msra.mxu0 0
        %743 = vmatprep.subr.bf16.mxu0 0
        %744 = vmatpush1.bf16.xpose.msra.mxu0 0
        %745 = vmatprep.subr.bf16.mxu0 0
        %746 = vmatpush1.bf16.xpose.msra.mxu0 0
        %747 = vmatprep.subr.bf16.mxu0 0
        %748 = vmatpush1.bf16.xpose.msra.mxu0 0
        %749 = vmatprep.subr.bf16.mxu0 0
        %750 = vmatpush1.bf16.xpose.msra.mxu0 %v733
        %751 = vmatprep.subr.bf16.mxu0 0
        %752 = vmatpush2.bf16.xpose.msra.mxu0 0
        %753 = vmatprep.subr.bf16.mxu0 0
        %754 = vmatpush2.bf16.xpose.msra.mxu0 0
        %755 = vmatprep.subr.bf16.mxu0 0
        %756 = vmatpush2.bf16.xpose.msra.mxu0 0
        %757 = vmatprep.subr.bf16.mxu0 0
        %758 = vmatpush2.bf16.xpose.msra.mxu0 0
        %759 = vmatprep.subr.bf16.mxu0 0
        %760 = vmatpush2.bf16.xpose.msra.mxu0 0
        %761 = vmatprep.subr.bf16.mxu0 0
        %762 = vmatpush2.bf16.xpose.msra.mxu0 0
        %763 = vmatprep.subr.bf16.mxu0 0
        %764 = vmatpush2.bf16.xpose.msra.mxu0 0
        %765 = vmatprep.subr.bf16.mxu0 0
        %766 = vmatpush2.bf16.xpose.msra.mxu0 0
        %767 = vmatprep.mubr.bf16.mxu0 0
        %768 = vmatmul.mubr.bf16.gmra.mxu0 %v730
        %v769 = vpop.f32.mrf.mxu0
        %v770 = vadd.f32 %v527, %v769
        %v771 = vpop.f32.mrf.mxu0
        %v772 = vpop.f32.mrf.mxu0
        %v773 = vpop.f32.mrf.mxu0
        %774 = vdwg.mxu0
        %775 = vrot.lane.b32.xlu0 %v515, 96
        %v776 = vpop.permute.xlu0 %775
        %v778 = vsel %vm536, %v515, 0
        %v781 = vsel %vm536, %v776, 0
        %783 = vmatprep.subr.bf16.mxu0 0
        %784 = vmatpush1.bf16.xpose.msra.mxu0 0
        %785 = vmatprep.subr.bf16.mxu0 0
        %786 = vmatpush1.bf16.xpose.msra.mxu0 0
        %787 = vmatprep.subr.bf16.mxu0 0
        %788 = vmatpush1.bf16.xpose.msra.mxu0 0
        %789 = vmatprep.subr.bf16.mxu0 0
        %790 = vmatpush1.bf16.xpose.msra.mxu0 0
        %791 = vmatprep.subr.bf16.mxu0 0
        %792 = vmatpush1.bf16.xpose.msra.mxu0 0
        %793 = vmatprep.subr.bf16.mxu0 0
        %794 = vmatpush1.bf16.xpose.msra.mxu0 0
        %795 = vmatprep.subr.bf16.mxu0 0
        %796 = vmatpush1.bf16.xpose.msra.mxu0 0
        %797 = vmatprep.subr.bf16.mxu0 0
        %798 = vmatpush1.bf16.xpose.msra.mxu0 %v781
        %799 = vmatprep.subr.bf16.mxu0 0
        %800 = vmatpush2.bf16.xpose.msra.mxu0 0
        %801 = vmatprep.subr.bf16.mxu0 0
        %802 = vmatpush2.bf16.xpose.msra.mxu0 0
        %803 = vmatprep.subr.bf16.mxu0 0
        %804 = vmatpush2.bf16.xpose.msra.mxu0 0
        %805 = vmatprep.subr.bf16.mxu0 0
        %806 = vmatpush2.bf16.xpose.msra.mxu0 0
        %807 = vmatprep.subr.bf16.mxu0 0
        %808 = vmatpush2.bf16.xpose.msra.mxu0 0
        %809 = vmatprep.subr.bf16.mxu0 0
        %810 = vmatpush2.bf16.xpose.msra.mxu0 0
        %811 = vmatprep.subr.bf16.mxu0 0
        %812 = vmatpush2.bf16.xpose.msra.mxu0 0
        %813 = vmatprep.subr.bf16.mxu0 0
        %814 = vmatpush2.bf16.xpose.msra.mxu0 0
        %815 = vmatprep.mubr.bf16.mxu0 0
        %816 = vmatmul.mubr.bf16.gmra.mxu0 %v778
        %v817 = vpop.f32.mrf.mxu0
        %v818 = vadd.f32 %v531, %v817
        %v819 = vpop.f32.mrf.mxu0
        %v820 = vpop.f32.mrf.mxu0
        %v821 = vpop.f32.mrf.mxu0
        %822 = vdwg.mxu0
        %823 = vrot.lane.b32.xlu0 %v517, 96
        %v824 = vpop.permute.xlu0 %823
        %v826 = vsel %vm536, %v517, 0
        %v829 = vsel %vm536, %v824, 0
        %831 = vmatprep.subr.bf16.mxu0 0
        %832 = vmatpush1.bf16.xpose.msra.mxu0 0
        %833 = vmatprep.subr.bf16.mxu0 0
        %834 = vmatpush1.bf16.xpose.msra.mxu0 0
        %835 = vmatprep.subr.bf16.mxu0 0
        %836 = vmatpush1.bf16.xpose.msra.mxu0 0
        %837 = vmatprep.subr.bf16.mxu0 0
        %838 = vmatpush1.bf16.xpose.msra.mxu0 0
        %839 = vmatprep.subr.bf16.mxu0 0
        %840 = vmatpush1.bf16.xpose.msra.mxu0 0
        %841 = vmatprep.subr.bf16.mxu0 0
        %842 = vmatpush1.bf16.xpose.msra.mxu0 0
        %843 = vmatprep.subr.bf16.mxu0 0
        %844 = vmatpush1.bf16.xpose.msra.mxu0 0
        %845 = vmatprep.subr.bf16.mxu0 0
        %846 = vmatpush1.bf16.xpose.msra.mxu0 %v829
        %847 = vmatprep.subr.bf16.mxu0 0
        %848 = vmatpush2.bf16.xpose.msra.mxu0 0
        %849 = vmatprep.subr.bf16.mxu0 0
        %850 = vmatpush2.bf16.xpose.msra.mxu0 0
        %851 = vmatprep.subr.bf16.mxu0 0
        %852 = vmatpush2.bf16.xpose.msra.mxu0 0
        %853 = vmatprep.subr.bf16.mxu0 0
        %854 = vmatpush2.bf16.xpose.msra.mxu0 0
        %855 = vmatprep.subr.bf16.mxu0 0
        %856 = vmatpush2.bf16.xpose.msra.mxu0 0
        %857 = vmatprep.subr.bf16.mxu0 0
        %858 = vmatpush2.bf16.xpose.msra.mxu0 0
        %859 = vmatprep.subr.bf16.mxu0 0
        %860 = vmatpush2.bf16.xpose.msra.mxu0 0
        %861 = vmatprep.subr.bf16.mxu0 0
        %862 = vmatpush2.bf16.xpose.msra.mxu0 0
        %863 = vmatprep.mubr.bf16.mxu0 0
        %864 = vmatmul.mubr.bf16.gmra.mxu0 %v826
        %v865 = vpop.f32.mrf.mxu0
        %v866 = vadd.f32 %v527, %v865
        %v867 = vpop.f32.mrf.mxu0
        %v868 = vpop.f32.mrf.mxu0
        %v869 = vpop.f32.mrf.mxu0
        %870 = vdwg.mxu0
        %871 = vrot.lane.b32.xlu0 %v519, 96
        %v872 = vpop.permute.xlu0 %871
        %v874 = vsel %vm536, %v519, 0
        %v877 = vsel %vm536, %v872, 0
        %879 = vmatprep.subr.bf16.mxu0 0
        %880 = vmatpush1.bf16.xpose.msra.mxu0 0
        %881 = vmatprep.subr.bf16.mxu0 0
        %882 = vmatpush1.bf16.xpose.msra.mxu0 0
        %883 = vmatprep.subr.bf16.mxu0 0
        %884 = vmatpush1.bf16.xpose.msra.mxu0 0
        %885 = vmatprep.subr.bf16.mxu0 0
        %886 = vmatpush1.bf16.xpose.msra.mxu0 0
        %887 = vmatprep.subr.bf16.mxu0 0
        %888 = vmatpush1.bf16.xpose.msra.mxu0 0
        %889 = vmatprep.subr.bf16.mxu0 0
        %890 = vmatpush1.bf16.xpose.msra.mxu0 0
        %891 = vmatprep.subr.bf16.mxu0 0
        %892 = vmatpush1.bf16.xpose.msra.mxu0 0
        %893 = vmatprep.subr.bf16.mxu0 0
        %894 = vmatpush1.bf16.xpose.msra.mxu0 %v877
        %895 = vmatprep.subr.bf16.mxu0 0
        %896 = vmatpush2.bf16.xpose.msra.mxu0 0
        %897 = vmatprep.subr.bf16.mxu0 0
        %898 = vmatpush2.bf16.xpose.msra.mxu0 0
        %899 = vmatprep.subr.bf16.mxu0 0
        %900 = vmatpush2.bf16.xpose.msra.mxu0 0
        %901 = vmatprep.subr.bf16.mxu0 0
        %902 = vmatpush2.bf16.xpose.msra.mxu0 0
        %903 = vmatprep.subr.bf16.mxu0 0
        %904 = vmatpush2.bf16.xpose.msra.mxu0 0
        %905 = vmatprep.subr.bf16.mxu0 0
        %906 = vmatpush2.bf16.xpose.msra.mxu0 0
        %907 = vmatprep.subr.bf16.mxu0 0
        %908 = vmatpush2.bf16.xpose.msra.mxu0 0
        %909 = vmatprep.subr.bf16.mxu0 0
        %910 = vmatpush2.bf16.xpose.msra.mxu0 0
        %911 = vmatprep.mubr.bf16.mxu0 0
        %912 = vmatmul.mubr.bf16.gmra.mxu0 %v874
        %v913 = vpop.f32.mrf.mxu0
        %v914 = vadd.f32 %v531, %v913
        %v915 = vpop.f32.mrf.mxu0
        %v916 = vpop.f32.mrf.mxu0
        %v917 = vpop.f32.mrf.mxu0
        %918 = vdwg.mxu0
        %v919 = vsel %vm536, %v578, -inf
        %920 = vmax.xlane.f32.xlu0 %v919
        %v921 = vpop.xlane.xlu0 %920
        %v922 = vsel %vm536, %v626, -inf
        %923 = vmax.xlane.f32.xlu0 %v922
        %v924 = vpop.xlane.xlu0 %923
        %v925 = vsel %vm536, %v674, -inf
        %926 = vmax.xlane.f32.xlu0 %v925
        %v927 = vpop.xlane.xlu0 %926
        %v928 = vsel %vm536, %v722, -inf
        %929 = vmax.xlane.f32.xlu0 %v928
        %v930 = vpop.xlane.xlu0 %929
        %v931 = vsel %vm536, %v770, -inf
        %932 = vmax.xlane.f32.xlu0 %v931
        %v933 = vpop.xlane.xlu0 %932
        %v934 = vsel %vm536, %v818, -inf
        %935 = vmax.xlane.f32.xlu0 %v934
        %v936 = vpop.xlane.xlu0 %935
        %v937 = vsel %vm536, %v866, -inf
        %938 = vmax.xlane.f32.xlu0 %v937
        %v939 = vpop.xlane.xlu0 %938
        %v940 = vsel %vm536, %v914, -inf
        %941 = vmax.xlane.f32.xlu0 %v940
        %v942 = vpop.xlane.xlu0 %941
        %v943 = vsub.f32 %v578, %v921
        %v944 = vsub.f32 %v626, %v924
        %v945 = vsub.f32 %v674, %v927
        %v946 = vsub.f32 %v722, %v930
        %v947 = vsub.f32 %v770, %v933
        %v948 = vsub.f32 %v818, %v936
        %v949 = vsub.f32 %v866, %v939
        %v950 = vsub.f32 %v914, %v942
        %v951 = vmul.f32 %v943, 1.442695
        %v952 = vpow.pop %v951
        %v953 = vmul.f32 %v944, 1.442695
        %v954 = vpow.pop %v953
        %v955 = vmul.f32 %v945, 1.442695
        %v956 = vpow.pop %v955
        %v957 = vmul.f32 %v946, 1.442695
        %v958 = vpow.pop %v957
        %v959 = vmul.f32 %v947, 1.442695
        %v960 = vpow.pop %v959
        %v961 = vmul.f32 %v948, 1.442695
        %v962 = vpow.pop %v961
        %v963 = vmul.f32 %v949, 1.442695
        %v964 = vpow.pop %v963
        %v965 = vmul.f32 %v950, 1.442695
        %v966 = vpow.pop %v965
        %v967 = vsel %vm536, %v952, 0.0
        %968 = vadd.xlane.f32.xlu0 %v967
        %v969 = vpop.xlane.xlu0 %968
        %v970 = vsel %vm536, %v954, 0.0
        %971 = vadd.xlane.f32.xlu0 %v970
        %v972 = vpop.xlane.xlu0 %971
        %v973 = vsel %vm536, %v956, 0.0
        %974 = vadd.xlane.f32.xlu0 %v973
        %v975 = vpop.xlane.xlu0 %974
        %v976 = vsel %vm536, %v958, 0.0
        %977 = vadd.xlane.f32.xlu0 %v976
        %v978 = vpop.xlane.xlu0 %977
        %v979 = vsel %vm536, %v960, 0.0
        %980 = vadd.xlane.f32.xlu0 %v979
        %v981 = vpop.xlane.xlu0 %980
        %v982 = vsel %vm536, %v962, 0.0
        %983 = vadd.xlane.f32.xlu0 %v982
        %v984 = vpop.xlane.xlu0 %983
        %v985 = vsel %vm536, %v964, 0.0
        %986 = vadd.xlane.f32.xlu0 %v985
        %v987 = vpop.xlane.xlu0 %986
        %v988 = vsel %vm536, %v966, 0.0
        %989 = vadd.xlane.f32.xlu0 %v988
        %v990 = vpop.xlane.xlu0 %989
        %v991 = vrcp.pop %v969
        %v992 = vrcp.pop %v972
        %v993 = vrcp.pop %v975
        %v994 = vrcp.pop %v978
        %v995 = vrcp.pop %v981
        %v996 = vrcp.pop %v984
        %v997 = vrcp.pop %v987
        %v998 = vrcp.pop %v990
        %v999 = vmul.f32 %v952, %v991
        %v1000 = vmul.f32 %v954, %v992
        %v1001 = vmul.f32 %v956, %v993
        %v1002 = vmul.f32 %v958, %v994
        %v1003 = vmul.f32 %v960, %v995
        %v1004 = vmul.f32 %v962, %v996
        %v1005 = vmul.f32 %v964, %v997
        %v1006 = vmul.f32 %v966, %v998
        %v1007 = vpack.c.bf16 %v999, %v999
        %v1008 = vpack.c.bf16 %v1000, %v1000
        %v1009 = vpack.c.bf16 %v1001, %v1001
        %v1010 = vpack.c.bf16 %v1002, %v1002
        %v1011 = vpack.c.bf16 %v1003, %v1003
        %v1012 = vpack.c.bf16 %v1004, %v1004
        %v1013 = vpack.c.bf16 %v1005, %v1005
        %v1014 = vpack.c.bf16 %v1006, %v1006
        %1015 = vrot.lane.b32.xlu0 %v504, 64
        %v1016 = vpop.permute.xlu0 %1015
        %v1018 = vsel %vm536, %v1007, 0
        %vm1020 = vcmask 1043456
        %v1022 = vsel %vm1020, %v1016, 0
        %1024 = vmatprep.subr.bf16.mxu0 0
        %1025 = vmatpush1.bf16.msra.mxu0 0
        %1026 = vmatprep.subr.bf16.mxu0 0
        %1027 = vmatpush1.bf16.msra.mxu0 0
        %1028 = vmatprep.subr.bf16.mxu0 0
        %1029 = vmatpush1.bf16.msra.mxu0 0
        %1030 = vmatprep.subr.bf16.mxu0 0
        %1031 = vmatpush1.bf16.msra.mxu0 0
        %1032 = vmatprep.subr.bf16.mxu0 0
        %1033 = vmatpush1.bf16.msra.mxu0 0
        %1034 = vmatprep.subr.bf16.mxu0 0
        %1035 = vmatpush1.bf16.msra.mxu0 0
        %1036 = vmatprep.subr.bf16.mxu0 0
        %1037 = vmatpush1.bf16.msra.mxu0 0
        %1038 = vmatprep.subr.bf16.mxu0 0
        %1039 = vmatpush1.bf16.msra.mxu0 %v1022
        %1040 = vmatprep.subr.bf16.mxu0 0
        %1041 = vmatpush2.bf16.msra.mxu0 0
        %1042 = vmatprep.subr.bf16.mxu0 0
        %1043 = vmatpush2.bf16.msra.mxu0 0
        %1044 = vmatprep.subr.bf16.mxu0 0
        %1045 = vmatpush2.bf16.msra.mxu0 0
        %1046 = vmatprep.subr.bf16.mxu0 0
        %1047 = vmatpush2.bf16.msra.mxu0 0
        %1048 = vmatprep.subr.bf16.mxu0 0
        %1049 = vmatpush2.bf16.msra.mxu0 0
        %1050 = vmatprep.subr.bf16.mxu0 0
        %1051 = vmatpush2.bf16.msra.mxu0 0
        %1052 = vmatprep.subr.bf16.mxu0 0
        %1053 = vmatpush2.bf16.msra.mxu0 0
        %1054 = vmatprep.subr.bf16.mxu0 0
        %1055 = vmatpush2.bf16.msra.mxu0 0
        %1056 = vmatprep.mubr.bf16.mxu0 0
        %1057 = vmatmul.mubr.bf16.gmra.mxu0 %v1018
        %v1058 = vpop.f32.mrf.mxu0
        %v1059 = vadd.f32 0.0, %v1058
        %v1060 = vpop.f32.mrf.mxu0
        %v1061 = vpop.f32.mrf.mxu0
        %v1062 = vpop.f32.mrf.mxu0
        %1063 = vdwg.mxu0
        %1064 = vrot.lane.b32.xlu0 %v505, 64
        %v1065 = vpop.permute.xlu0 %1064
        %v1067 = vsel %vm536, %v1008, 0
        %v1070 = vsel %vm1020, %v1065, 0
        %1072 = vmatprep.subr.bf16.mxu0 0
        %1073 = vmatpush1.bf16.msra.mxu0 0
        %1074 = vmatprep.subr.bf16.mxu0 0
        %1075 = vmatpush1.bf16.msra.mxu0 0
        %1076 = vmatprep.subr.bf16.mxu0 0
        %1077 = vmatpush1.bf16.msra.mxu0 0
        %1078 = vmatprep.subr.bf16.mxu0 0
        %1079 = vmatpush1.bf16.msra.mxu0 0
        %1080 = vmatprep.subr.bf16.mxu0 0
        %1081 = vmatpush1.bf16.msra.mxu0 0
        %1082 = vmatprep.subr.bf16.mxu0 0
        %1083 = vmatpush1.bf16.msra.mxu0 0
        %1084 = vmatprep.subr.bf16.mxu0 0
        %1085 = vmatpush1.bf16.msra.mxu0 0
        %1086 = vmatprep.subr.bf16.mxu0 0
        %1087 = vmatpush1.bf16.msra.mxu0 %v1070
        %1088 = vmatprep.subr.bf16.mxu0 0
        %1089 = vmatpush2.bf16.msra.mxu0 0
        %1090 = vmatprep.subr.bf16.mxu0 0
        %1091 = vmatpush2.bf16.msra.mxu0 0
        %1092 = vmatprep.subr.bf16.mxu0 0
        %1093 = vmatpush2.bf16.msra.mxu0 0
        %1094 = vmatprep.subr.bf16.mxu0 0
        %1095 = vmatpush2.bf16.msra.mxu0 0
        %1096 = vmatprep.subr.bf16.mxu0 0
        %1097 = vmatpush2.bf16.msra.mxu0 0
        %1098 = vmatprep.subr.bf16.mxu0 0
        %1099 = vmatpush2.bf16.msra.mxu0 0
        %1100 = vmatprep.subr.bf16.mxu0 0
        %1101 = vmatpush2.bf16.msra.mxu0 0
        %1102 = vmatprep.subr.bf16.mxu0 0
        %1103 = vmatpush2.bf16.msra.mxu0 0
        %1104 = vmatprep.mubr.bf16.mxu0 0
        %1105 = vmatmul.mubr.bf16.gmra.mxu0 %v1067
        %v1106 = vpop.f32.mrf.mxu0
        %v1107 = vadd.f32 0.0, %v1106
        %v1108 = vpop.f32.mrf.mxu0
        %v1109 = vpop.f32.mrf.mxu0
        %v1110 = vpop.f32.mrf.mxu0
        %1111 = vdwg.mxu0
        %1112 = vrot.lane.b32.xlu0 %v509, 64
        %v1113 = vpop.permute.xlu0 %1112
        %v1115 = vsel %vm536, %v1009, 0
        %v1118 = vsel %vm1020, %v1113, 0
        %1120 = vmatprep.subr.bf16.mxu0 0
        %1121 = vmatpush1.bf16.msra.mxu0 0
        %1122 = vmatprep.subr.bf16.mxu0 0
        %1123 = vmatpush1.bf16.msra.mxu0 0
        %1124 = vmatprep.subr.bf16.mxu0 0
        %1125 = vmatpush1.bf16.msra.mxu0 0
        %1126 = vmatprep.subr.bf16.mxu0 0
        %1127 = vmatpush1.bf16.msra.mxu0 0
        %1128 = vmatprep.subr.bf16.mxu0 0
        %1129 = vmatpush1.bf16.msra.mxu0 0
        %1130 = vmatprep.subr.bf16.mxu0 0
        %1131 = vmatpush1.bf16.msra.mxu0 0
        %1132 = vmatprep.subr.bf16.mxu0 0
        %1133 = vmatpush1.bf16.msra.mxu0 0
        %1134 = vmatprep.subr.bf16.mxu0 0
        %1135 = vmatpush1.bf16.msra.mxu0 %v1118
        %1136 = vmatprep.subr.bf16.mxu0 0
        %1137 = vmatpush2.bf16.msra.mxu0 0
        %1138 = vmatprep.subr.bf16.mxu0 0
        %1139 = vmatpush2.bf16.msra.mxu0 0
        %1140 = vmatprep.subr.bf16.mxu0 0
        %1141 = vmatpush2.bf16.msra.mxu0 0
        %1142 = vmatprep.subr.bf16.mxu0 0
        %1143 = vmatpush2.bf16.msra.mxu0 0
        %1144 = vmatprep.subr.bf16.mxu0 0
        %1145 = vmatpush2.bf16.msra.mxu0 0
        %1146 = vmatprep.subr.bf16.mxu0 0
        %1147 = vmatpush2.bf16.msra.mxu0 0
        %1148 = vmatprep.subr.bf16.mxu0 0
        %1149 = vmatpush2.bf16.msra.mxu0 0
        %1150 = vmatprep.subr.bf16.mxu0 0
        %1151 = vmatpush2.bf16.msra.mxu0 0
        %1152 = vmatprep.mubr.bf16.mxu0 0
        %1153 = vmatmul.mubr.bf16.gmra.mxu0 %v1115
        %v1154 = vpop.f32.mrf.mxu0
        %v1155 = vadd.f32 0.0, %v1154
        %v1156 = vpop.f32.mrf.mxu0
        %v1157 = vpop.f32.mrf.mxu0
        %v1158 = vpop.f32.mrf.mxu0
        %1159 = vdwg.mxu0
        %1160 = vrot.lane.b32.xlu0 %v511, 64
        %v1161 = vpop.permute.xlu0 %1160
        %v1163 = vsel %vm536, %v1010, 0
        %v1166 = vsel %vm1020, %v1161, 0
        %1168 = vmatprep.subr.bf16.mxu0 0
        %1169 = vmatpush1.bf16.msra.mxu0 0
        %1170 = vmatprep.subr.bf16.mxu0 0
        %1171 = vmatpush1.bf16.msra.mxu0 0
        %1172 = vmatprep.subr.bf16.mxu0 0
        %1173 = vmatpush1.bf16.msra.mxu0 0
        %1174 = vmatprep.subr.bf16.mxu0 0
        %1175 = vmatpush1.bf16.msra.mxu0 0
        %1176 = vmatprep.subr.bf16.mxu0 0
        %1177 = vmatpush1.bf16.msra.mxu0 0
        %1178 = vmatprep.subr.bf16.mxu0 0
        %1179 = vmatpush1.bf16.msra.mxu0 0
        %1180 = vmatprep.subr.bf16.mxu0 0
        %1181 = vmatpush1.bf16.msra.mxu0 0
        %1182 = vmatprep.subr.bf16.mxu0 0
        %1183 = vmatpush1.bf16.msra.mxu0 %v1166
        %1184 = vmatprep.subr.bf16.mxu0 0
        %1185 = vmatpush2.bf16.msra.mxu0 0
        %1186 = vmatprep.subr.bf16.mxu0 0
        %1187 = vmatpush2.bf16.msra.mxu0 0
        %1188 = vmatprep.subr.bf16.mxu0 0
        %1189 = vmatpush2.bf16.msra.mxu0 0
        %1190 = vmatprep.subr.bf16.mxu0 0
        %1191 = vmatpush2.bf16.msra.mxu0 0
        %1192 = vmatprep.subr.bf16.mxu0 0
        %1193 = vmatpush2.bf16.msra.mxu0 0
        %1194 = vmatprep.subr.bf16.mxu0 0
        %1195 = vmatpush2.bf16.msra.mxu0 0
        %1196 = vmatprep.subr.bf16.mxu0 0
        %1197 = vmatpush2.bf16.msra.mxu0 0
        %1198 = vmatprep.subr.bf16.mxu0 0
        %1199 = vmatpush2.bf16.msra.mxu0 0
        %1200 = vmatprep.mubr.bf16.mxu0 0
        %1201 = vmatmul.mubr.bf16.gmra.mxu0 %v1163
        %v1202 = vpop.f32.mrf.mxu0
        %v1203 = vadd.f32 0.0, %v1202
        %v1204 = vpop.f32.mrf.mxu0
        %v1205 = vpop.f32.mrf.mxu0
        %v1206 = vpop.f32.mrf.mxu0
        %1207 = vdwg.mxu0
        %1208 = vrot.lane.b32.xlu0 %v513, 64
        %v1209 = vpop.permute.xlu0 %1208
        %v1211 = vsel %vm536, %v1011, 0
        %v1214 = vsel %vm1020, %v1209, 0
        %1216 = vmatprep.subr.bf16.mxu0 0
        %1217 = vmatpush1.bf16.msra.mxu0 0
        %1218 = vmatprep.subr.bf16.mxu0 0
        %1219 = vmatpush1.bf16.msra.mxu0 0
        %1220 = vmatprep.subr.bf16.mxu0 0
        %1221 = vmatpush1.bf16.msra.mxu0 0
        %1222 = vmatprep.subr.bf16.mxu0 0
        %1223 = vmatpush1.bf16.msra.mxu0 0
        %1224 = vmatprep.subr.bf16.mxu0 0
        %1225 = vmatpush1.bf16.msra.mxu0 0
        %1226 = vmatprep.subr.bf16.mxu0 0
        %1227 = vmatpush1.bf16.msra.mxu0 0
        %1228 = vmatprep.subr.bf16.mxu0 0
        %1229 = vmatpush1.bf16.msra.mxu0 0
        %1230 = vmatprep.subr.bf16.mxu0 0
        %1231 = vmatpush1.bf16.msra.mxu0 %v1214
        %1232 = vmatprep.subr.bf16.mxu0 0
        %1233 = vmatpush2.bf16.msra.mxu0 0
        %1234 = vmatprep.subr.bf16.mxu0 0
        %1235 = vmatpush2.bf16.msra.mxu0 0
        %1236 = vmatprep.subr.bf16.mxu0 0
        %1237 = vmatpush2.bf16.msra.mxu0 0
        %1238 = vmatprep.subr.bf16.mxu0 0
        %1239 = vmatpush2.bf16.msra.mxu0 0
        %1240 = vmatprep.subr.bf16.mxu0 0
        %1241 = vmatpush2.bf16.msra.mxu0 0
        %1242 = vmatprep.subr.bf16.mxu0 0
        %1243 = vmatpush2.bf16.msra.mxu0 0
        %1244 = vmatprep.subr.bf16.mxu0 0
        %1245 = vmatpush2.bf16.msra.mxu0 0
        %1246 = vmatprep.subr.bf16.mxu0 0
        %1247 = vmatpush2.bf16.msra.mxu0 0
        %1248 = vmatprep.mubr.bf16.mxu0 0
        %1249 = vmatmul.mubr.bf16.gmra.mxu0 %v1211
        %v1250 = vpop.f32.mrf.mxu0
        %v1251 = vadd.f32 0.0, %v1250
        %v1252 = vpop.f32.mrf.mxu0
        %v1253 = vpop.f32.mrf.mxu0
        %v1254 = vpop.f32.mrf.mxu0
        %1255 = vdwg.mxu0
        %1256 = vrot.lane.b32.xlu0 %v515, 64
        %v1257 = vpop.permute.xlu0 %1256
        %v1259 = vsel %vm536, %v1012, 0
        %v1262 = vsel %vm1020, %v1257, 0
        %1264 = vmatprep.subr.bf16.mxu0 0
        %1265 = vmatpush1.bf16.msra.mxu0 0
        %1266 = vmatprep.subr.bf16.mxu0 0
        %1267 = vmatpush1.bf16.msra.mxu0 0
        %1268 = vmatprep.subr.bf16.mxu0 0
        %1269 = vmatpush1.bf16.msra.mxu0 0
        %1270 = vmatprep.subr.bf16.mxu0 0
        %1271 = vmatpush1.bf16.msra.mxu0 0
        %1272 = vmatprep.subr.bf16.mxu0 0
        %1273 = vmatpush1.bf16.msra.mxu0 0
        %1274 = vmatprep.subr.bf16.mxu0 0
        %1275 = vmatpush1.bf16.msra.mxu0 0
        %1276 = vmatprep.subr.bf16.mxu0 0
        %1277 = vmatpush1.bf16.msra.mxu0 0
        %1278 = vmatprep.subr.bf16.mxu0 0
        %1279 = vmatpush1.bf16.msra.mxu0 %v1262
        %1280 = vmatprep.subr.bf16.mxu0 0
        %1281 = vmatpush2.bf16.msra.mxu0 0
        %1282 = vmatprep.subr.bf16.mxu0 0
        %1283 = vmatpush2.bf16.msra.mxu0 0
        %1284 = vmatprep.subr.bf16.mxu0 0
        %1285 = vmatpush2.bf16.msra.mxu0 0
        %1286 = vmatprep.subr.bf16.mxu0 0
        %1287 = vmatpush2.bf16.msra.mxu0 0
        %1288 = vmatprep.subr.bf16.mxu0 0
        %1289 = vmatpush2.bf16.msra.mxu0 0
        %1290 = vmatprep.subr.bf16.mxu0 0
        %1291 = vmatpush2.bf16.msra.mxu0 0
        %1292 = vmatprep.subr.bf16.mxu0 0
        %1293 = vmatpush2.bf16.msra.mxu0 0
        %1294 = vmatprep.subr.bf16.mxu0 0
        %1295 = vmatpush2.bf16.msra.mxu0 0
        %1296 = vmatprep.mubr.bf16.mxu0 0
        %1297 = vmatmul.mubr.bf16.gmra.mxu0 %v1259
        %v1298 = vpop.f32.mrf.mxu0
        %v1299 = vadd.f32 0.0, %v1298
        %v1300 = vpop.f32.mrf.mxu0
        %v1301 = vpop.f32.mrf.mxu0
        %v1302 = vpop.f32.mrf.mxu0
        %1303 = vdwg.mxu0
        %1304 = vrot.lane.b32.xlu0 %v517, 64
        %v1305 = vpop.permute.xlu0 %1304
        %v1307 = vsel %vm536, %v1013, 0
        %v1310 = vsel %vm1020, %v1305, 0
        %1312 = vmatprep.subr.bf16.mxu0 0
        %1313 = vmatpush1.bf16.msra.mxu0 0
        %1314 = vmatprep.subr.bf16.mxu0 0
        %1315 = vmatpush1.bf16.msra.mxu0 0
        %1316 = vmatprep.subr.bf16.mxu0 0
        %1317 = vmatpush1.bf16.msra.mxu0 0
        %1318 = vmatprep.subr.bf16.mxu0 0
        %1319 = vmatpush1.bf16.msra.mxu0 0
        %1320 = vmatprep.subr.bf16.mxu0 0
        %1321 = vmatpush1.bf16.msra.mxu0 0
        %1322 = vmatprep.subr.bf16.mxu0 0
        %1323 = vmatpush1.bf16.msra.mxu0 0
        %1324 = vmatprep.subr.bf16.mxu0 0
        %1325 = vmatpush1.bf16.msra.mxu0 0
        %1326 = vmatprep.subr.bf16.mxu0 0
        %1327 = vmatpush1.bf16.msra.mxu0 %v1310
        %1328 = vmatprep.subr.bf16.mxu0 0
        %1329 = vmatpush2.bf16.msra.mxu0 0
        %1330 = vmatprep.subr.bf16.mxu0 0
        %1331 = vmatpush2.bf16.msra.mxu0 0
        %1332 = vmatprep.subr.bf16.mxu0 0
        %1333 = vmatpush2.bf16.msra.mxu0 0
        %1334 = vmatprep.subr.bf16.mxu0 0
        %1335 = vmatpush2.bf16.msra.mxu0 0
        %1336 = vmatprep.subr.bf16.mxu0 0
        %1337 = vmatpush2.bf16.msra.mxu0 0
        %1338 = vmatprep.subr.bf16.mxu0 0
        %1339 = vmatpush2.bf16.msra.mxu0 0
        %1340 = vmatprep.subr.bf16.mxu0 0
        %1341 = vmatpush2.bf16.msra.mxu0 0
        %1342 = vmatprep.subr.bf16.mxu0 0
        %1343 = vmatpush2.bf16.msra.mxu0 0
        %1344 = vmatprep.mubr.bf16.mxu0 0
        %1345 = vmatmul.mubr.bf16.gmra.mxu0 %v1307
        %v1346 = vpop.f32.mrf.mxu0
        %v1347 = vadd.f32 0.0, %v1346
        %v1348 = vpop.f32.mrf.mxu0
        %v1349 = vpop.f32.mrf.mxu0
        %v1350 = vpop.f32.mrf.mxu0
        %1351 = vdwg.mxu0
        %1352 = vrot.lane.b32.xlu0 %v519, 64
        %v1353 = vpop.permute.xlu0 %1352
        %v1355 = vsel %vm536, %v1014, 0
        %v1358 = vsel %vm1020, %v1353, 0
        %1360 = vmatprep.subr.bf16.mxu0 0
        %1361 = vmatpush1.bf16.msra.mxu0 0
        %1362 = vmatprep.subr.bf16.mxu0 0
        %1363 = vmatpush1.bf16.msra.mxu0 0
        %1364 = vmatprep.subr.bf16.mxu0 0
        %1365 = vmatpush1.bf16.msra.mxu0 0
        %1366 = vmatprep.subr.bf16.mxu0 0
        %1367 = vmatpush1.bf16.msra.mxu0 0
        %1368 = vmatprep.subr.bf16.mxu0 0
        %1369 = vmatpush1.bf16.msra.mxu0 0
        %1370 = vmatprep.subr.bf16.mxu0 0
        %1371 = vmatpush1.bf16.msra.mxu0 0
        %1372 = vmatprep.subr.bf16.mxu0 0
        %1373 = vmatpush1.bf16.msra.mxu0 0
        %1374 = vmatprep.subr.bf16.mxu0 0
        %1375 = vmatpush1.bf16.msra.mxu0 %v1358
        %1376 = vmatprep.subr.bf16.mxu0 0
        %1377 = vmatpush2.bf16.msra.mxu0 0
        %1378 = vmatprep.subr.bf16.mxu0 0
        %1379 = vmatpush2.bf16.msra.mxu0 0
        %1380 = vmatprep.subr.bf16.mxu0 0
        %1381 = vmatpush2.bf16.msra.mxu0 0
        %1382 = vmatprep.subr.bf16.mxu0 0
        %1383 = vmatpush2.bf16.msra.mxu0 0
        %1384 = vmatprep.subr.bf16.mxu0 0
        %1385 = vmatpush2.bf16.msra.mxu0 0
        %1386 = vmatprep.subr.bf16.mxu0 0
        %1387 = vmatpush2.bf16.msra.mxu0 0
        %1388 = vmatprep.subr.bf16.mxu0 0
        %1389 = vmatpush2.bf16.msra.mxu0 0
        %1390 = vmatprep.subr.bf16.mxu0 0
        %1391 = vmatpush2.bf16.msra.mxu0 0
        %1392 = vmatprep.mubr.bf16.mxu0 0
        %1393 = vmatmul.mubr.bf16.gmra.mxu0 %v1355
        %v1394 = vpop.f32.mrf.mxu0
        %v1395 = vadd.f32 0.0, %v1394
        %v1396 = vpop.f32.mrf.mxu0
        %v1397 = vpop.f32.mrf.mxu0
        %v1398 = vpop.f32.mrf.mxu0
        %1399 = vdwg.mxu0
        %1402 = vrot.lane.b32.xlu0 %v1155, 8
        %v1403 = vpop.permute.xlu0 %1402
        %1404 = vrot.lane.b32.xlu0 %v1203, 8
        %v1405 = vpop.permute.xlu0 %1404
        %1410 = vrot.lane.b32.xlu0 %v1251, 16
        %v1411 = vpop.permute.xlu0 %1410
        %1412 = vrot.lane.b32.xlu0 %v1299, 16
        %v1413 = vpop.permute.xlu0 %1412
        %1418 = vrot.lane.b32.xlu0 %v1347, 24
        %v1419 = vpop.permute.xlu0 %1418
        %1420 = vrot.lane.b32.xlu0 %v1395, 24
        %v1421 = vpop.permute.xlu0 %1420
        %v1424 = vsel %vm536, %v1059, %v1403
        %v1425 = vsel %vm536, %v1107, %v1405
        %vm1426 = vcmask 130048
        %v1427 = vsel %vm1426, %v1424, %v1411
        %v1428 = vsel %vm1426, %v1425, %v1413
        %vm1429 = vcmask 195584
        %v1430 = vsel %vm1429, %v1427, %v1419
        %v1431 = vsel %vm1429, %v1428, %v1421
        %v1432 = vpack.c.bf16 %v1431, %v1430
        %v1433 = vld [vmem:[%s413] sm:$0xf]
        %v1434 = vld [vmem:[%s413 + $0x4] sm:$0xf]
        %v1435 = vld [vmem:[%s413 + $0x8] sm:$0xf]
        %v1436 = vld [vmem:[%s413 + $0xc] sm:$0xf]
        %v1437 = vlaneseq
        %v1438 = vshrl.u32 %v1437, 7
        %v1439 = vsub.s32 2, %v1438
        %v1440 = vrot.slane %v435, %v1439
        %v1445 = vunpack.c.l.b16 %v1433
        %v1446 = vunpack.c.l.b16 %v1434
        %v1447 = vunpack.c.l.b16 %v1435
        %v1448 = vunpack.c.l.b16 %v1436
        %v1449 = vpack.c.b16 %v1446, %v1445
        %v1450 = vpack.c.b16 %v1448, %v1447
        %v1454 = vsel %vm459, %v1432, 0
        %1456 = vmatprep.subr.bf16.mxu0 0
        %1457 = vmatpush1.bf16.msra.mxu0 0
        %1458 = vmatprep.subr.bf16.mxu0 0
        %1459 = vmatpush1.bf16.msra.mxu0 0
        %1460 = vmatprep.subr.bf16.mxu0 0
        %1461 = vmatpush1.bf16.msra.mxu0 0
        %1462 = vmatprep.subr.bf16.mxu0 0
        %1463 = vmatpush1.bf16.msra.mxu0 0
        %1464 = vmatprep.subr.bf16.mxu0 0
        %1465 = vmatpush1.bf16.msra.mxu0 0
        %1466 = vmatprep.subr.bf16.mxu0 0
        %1467 = vmatpush1.bf16.msra.mxu0 0
        %1468 = vmatprep.subr.bf16.mxu0 0
        %1469 = vmatpush1.bf16.msra.mxu0 %v1450
        %1470 = vmatprep.subr.bf16.mxu0 0
        %1471 = vmatpush1.bf16.msra.mxu0 %v1449
        %1472 = vmatprep.subr.bf16.mxu0 0
        %1473 = vmatpush2.bf16.msra.mxu0 0
        %1474 = vmatprep.subr.bf16.mxu0 0
        %1475 = vmatpush2.bf16.msra.mxu0 0
        %1476 = vmatprep.subr.bf16.mxu0 0
        %1477 = vmatpush2.bf16.msra.mxu0 0
        %1478 = vmatprep.subr.bf16.mxu0 0
        %1479 = vmatpush2.bf16.msra.mxu0 0
        %1480 = vmatprep.subr.bf16.mxu0 0
        %1481 = vmatpush2.bf16.msra.mxu0 0
        %1482 = vmatprep.subr.bf16.mxu0 0
        %1483 = vmatpush2.bf16.msra.mxu0 0
        %1484 = vmatprep.subr.bf16.mxu0 0
        %1485 = vmatpush2.bf16.msra.mxu0 0
        %1486 = vmatprep.subr.bf16.mxu0 0
        %1487 = vmatpush2.bf16.msra.mxu0 0
        %1488 = vmatprep.mubr.bf16.mxu0 0
        %1489 = vmatmul.mubr.bf16.gmra.mxu0 %v1454
        %v1490 = vpop.f32.mrf.mxu0
        %v1491 = vadd.f32 %v1440, %v1490
        %v1492 = vpop.f32.mrf.mxu0
        %v1493 = vpop.f32.mrf.mxu0
        %v1494 = vadd.f32 %v1440, %v1493
        %v1495 = vpop.f32.mrf.mxu0
        %1496 = vdwg.mxu0
        %v1497 = vadd.f32 %v436, %v1491
        %v1498 = vadd.f32 %v437, %v1494
        %v1499 = vsel %vm459, %v1497, 0.0
        %1500 = vadd.xlane.f32.xlu0 %v1499
        %v1501 = vpop.xlane.xlu0 %1500
        %v1502 = vsel %vm459, %v1498, 0.0
        %1503 = vadd.xlane.f32.xlu0 %v1502
        %v1504 = vpop.xlane.xlu0 %1503
        %v1505 = vrcp.pop 32.0
        %v1506 = vmul.f32 %v1501, %v1505
        %v1507 = vmul.f32 %v1504, %v1505
        %v1508 = vmul.f32 %v1497, %v1497
        %v1509 = vmul.f32 %v1498, %v1498
        %v1510 = vsel %vm459, %v1508, 0.0
        %1511 = vadd.xlane.f32.xlu0 %v1510
        %v1512 = vpop.xlane.xlu0 %1511
        %v1513 = vsel %vm459, %v1509, 0.0
        %1514 = vadd.xlane.f32.xlu0 %v1513
        %v1515 = vpop.xlane.xlu0 %1514
        %v1516 = vmul.f32 %v1512, %v1505
        %v1517 = vmul.f32 %v1515, %v1505
        %v1518 = vmul.f32 %v1506, %v1506
        %v1519 = vmul.f32 %v1507, %v1507
        %v1520 = vsub.f32 %v1516, %v1518
        %v1521 = vsub.f32 %v1517, %v1519
        %v1522 = vsub.f32 %v1497, %v1506
        %v1523 = vsub.f32 %v1498, %v1507
        %v1524 = vadd.f32 %v1520, 1e-05
        %v1525 = vadd.f32 %v1521, 1e-05
        %v1526 = vrsqrt.pop %v1524
        %v1527 = vrsqrt.pop %v1525
        %v1528 = vmul.f32 %v1522, %v1526
        %v1529 = vmul.f32 %v1523, %v1527
        %v1530 = vlaneseq
        %v1531 = vshrl.u32 %v1530, 7
        %v1532 = vsub.s32 3, %v1531
        %v1533 = vrot.slane %v435, %v1532
        %v1534 = vmul.f32 %v1528, %v1533
        %v1535 = vmul.f32 %v1529, %v1533
        %v1536 = vlaneseq
        %v1537 = vshrl.u32 %v1536, 7
        %v1538 = vsub.s32 4, %v1537
        %v1539 = vrot.slane %v435, %v1538
        %v1540 = vadd.f32 %v1534, %v1539
        %v1541 = vadd.f32 %v1535, %v1539
        %v1542 = vpack.c.bf16 %v1541, %v1540
        %v1543 = vld [vmem:[%s418] sm:$0xf]
        %v1544 = vld [vmem:[%s418 + $0x4] sm:$0xf]
        %v1545 = vld [vmem:[%s418 + $0x8] sm:$0xf]
        %v1546 = vld [vmem:[%s418 + $0xc] sm:$0xf]
        %v1547 = vlaneseq
        %v1548 = vshrl.u32 %v1547, 7
        %v1549 = vsub.s32 1, %v1548
        %v1550 = vrot.slane %v435, %v1549
        %v1555 = vunpack.c.l.b16 %v1543
        %v1556 = vunpack.c.l.b16 %v1544
        %v1557 = vunpack.c.l.b16 %v1545
        %v1558 = vunpack.c.l.b16 %v1546
        %v1559 = vpack.c.b16 %v1556, %v1555
        %v1560 = vpack.c.b16 %v1558, %v1557
        %v1564 = vsel %vm459, %v1542, 0
        %1566 = vmatprep.subr.bf16.mxu0 0
        %1567 = vmatpush1.bf16.msra.mxu0 0
        %1568 = vmatprep.subr.bf16.mxu0 0
        %1569 = vmatpush1.bf16.msra.mxu0 0
        %1570 = vmatprep.subr.bf16.mxu0 0
        %1571 = vmatpush1.bf16.msra.mxu0 0
        %1572 = vmatprep.subr.bf16.mxu0 0
        %1573 = vmatpush1.bf16.msra.mxu0 0
        %1574 = vmatprep.subr.bf16.mxu0 0
        %1575 = vmatpush1.bf16.msra.mxu0 0
        %1576 = vmatprep.subr.bf16.mxu0 0
        %1577 = vmatpush1.bf16.msra.mxu0 0
        %1578 = vmatprep.subr.bf16.mxu0 0
        %1579 = vmatpush1.bf16.msra.mxu0 %v1560
        %1580 = vmatprep.subr.bf16.mxu0 0
        %1581 = vmatpush1.bf16.msra.mxu0 %v1559
        %1582 = vmatprep.subr.bf16.mxu0 0
        %1583 = vmatpush2.bf16.msra.mxu0 0
        %1584 = vmatprep.subr.bf16.mxu0 0
        %1585 = vmatpush2.bf16.msra.mxu0 0
        %1586 = vmatprep.subr.bf16.mxu0 0
        %1587 = vmatpush2.bf16.msra.mxu0 0
        %1588 = vmatprep.subr.bf16.mxu0 0
        %1589 = vmatpush2.bf16.msra.mxu0 0
        %1590 = vmatprep.subr.bf16.mxu0 0
        %1591 = vmatpush2.bf16.msra.mxu0 0
        %1592 = vmatprep.subr.bf16.mxu0 0
        %1593 = vmatpush2.bf16.msra.mxu0 0
        %1594 = vmatprep.subr.bf16.mxu0 0
        %1595 = vmatpush2.bf16.msra.mxu0 0
        %1596 = vmatprep.subr.bf16.mxu0 0
        %1597 = vmatpush2.bf16.msra.mxu0 0
        %1598 = vmatprep.mubr.bf16.mxu0 0
        %1599 = vmatmul.mubr.bf16.gmra.mxu0 %v1564
        %v1600 = vpop.f32.mrf.mxu0
        %v1601 = vadd.f32 %v1550, %v1600
        %v1602 = vpop.f32.mrf.mxu0
        %v1603 = vpop.f32.mrf.mxu0
        %v1604 = vadd.f32 %v1550, %v1603
        %v1605 = vpop.f32.mrf.mxu0
        %1606 = vdwg.mxu0
        %v1607 = vmax.f32 %v1601, 0.0
        %v1608 = vmax.f32 %v1604, 0.0
        %v1609 = vpack.c.bf16 %v1608, %v1607
        %v1610 = vld [vmem:[%s423] sm:$0xf]
        %v1611 = vld [vmem:[%s423 + $0x4] sm:$0xf]
        %v1612 = vld [vmem:[%s423 + $0x8] sm:$0xf]
        %v1613 = vld [vmem:[%s423 + $0xc] sm:$0xf]
        %v1614 = vld [vmem:[%s423 + $0x10] sm:$0xf]
        %v1615 = vld [vmem:[%s423 + $0x14] sm:$0xf]
        %v1616 = vld [vmem:[%s423 + $0x18] sm:$0xf]
        %v1617 = vld [vmem:[%s423 + $0x1c] sm:$0xf]
        %v1618 = vlaneseq
        %v1619 = vshrl.u32 %v1618, 7
        %v1620 = vsub.s32 5, %v1619
        %v1621 = vrot.slane %v435, %v1620
        %v1630 = vunpack.c.l.b16 %v1610
        %v1631 = vunpack.c.l.b16 %v1611
        %v1632 = vunpack.c.l.b16 %v1612
        %v1633 = vunpack.c.l.b16 %v1613
        %v1634 = vunpack.c.l.b16 %v1614
        %v1635 = vunpack.c.l.b16 %v1615
        %v1636 = vunpack.c.l.b16 %v1616
        %v1637 = vunpack.c.l.b16 %v1617
        %v1638 = vpack.c.b16 %v1631, %v1630
        %v1639 = vpack.c.b16 %v1633, %v1632
        %v1640 = vpack.c.b16 %v1635, %v1634
        %v1641 = vpack.c.b16 %v1637, %v1636
        %vm1646 = vcmask 523264
        %v1648 = vsel %vm1646, %v1609, 0
        %1650 = vmatprep.subr.bf16.mxu0 0
        %1651 = vmatpush1.bf16.msra.mxu0 0
        %1652 = vmatprep.subr.bf16.mxu0 0
        %1653 = vmatpush1.bf16.msra.mxu0 0
        %1654 = vmatprep.subr.bf16.mxu0 0
        %1655 = vmatpush1.bf16.msra.mxu0 0
        %1656 = vmatprep.subr.bf16.mxu0 0
        %1657 = vmatpush1.bf16.msra.mxu0 0
        %1658 = vmatprep.subr.bf16.mxu0 0
        %1659 = vmatpush1.bf16.msra.mxu0 %v1641
        %1660 = vmatprep.subr.bf16.mxu0 0
        %1661 = vmatpush1.bf16.msra.mxu0 %v1640
        %1662 = vmatprep.subr.bf16.mxu0 0
        %1663 = vmatpush1.bf16.msra.mxu0 %v1639
        %1664 = vmatprep.subr.bf16.mxu0 0
        %1665 = vmatpush1.bf16.msra.mxu0 %v1638
        %1666 = vmatprep.subr.bf16.mxu0 0
        %1667 = vmatpush2.bf16.msra.mxu0 0
        %1668 = vmatprep.subr.bf16.mxu0 0
        %1669 = vmatpush2.bf16.msra.mxu0 0
        %1670 = vmatprep.subr.bf16.mxu0 0
        %1671 = vmatpush2.bf16.msra.mxu0 0
        %1672 = vmatprep.subr.bf16.mxu0 0
        %1673 = vmatpush2.bf16.msra.mxu0 0
        %1674 = vmatprep.subr.bf16.mxu0 0
        %1675 = vmatpush2.bf16.msra.mxu0 0
        %1676 = vmatprep.subr.bf16.mxu0 0
        %1677 = vmatpush2.bf16.msra.mxu0 0
        %1678 = vmatprep.subr.bf16.mxu0 0
        %1679 = vmatpush2.bf16.msra.mxu0 0
        %1680 = vmatprep.subr.bf16.mxu0 0
        %1681 = vmatpush2.bf16.msra.mxu0 0
        %1682 = vmatprep.mubr.bf16.mxu0 0
        %1683 = vmatmul.mubr.bf16.gmra.mxu0 %v1648
        %v1684 = vpop.f32.mrf.mxu0
        %v1685 = vadd.f32 %v1621, %v1684
        %v1686 = vpop.f32.mrf.mxu0
        %v1687 = vpop.f32.mrf.mxu0
        %v1688 = vadd.f32 %v1621, %v1687
        %v1689 = vpop.f32.mrf.mxu0
        %1690 = vdwg.mxu0
        %v1691 = vadd.f32 %v1540, %v1685
        %v1692 = vadd.f32 %v1541, %v1688
        %v1693 = vsel %vm459, %v1691, 0.0
        %1694 = vadd.xlane.f32.xlu0 %v1693
        %v1695 = vpop.xlane.xlu0 %1694
        %v1696 = vsel %vm459, %v1692, 0.0
        %1697 = vadd.xlane.f32.xlu0 %v1696
        %v1698 = vpop.xlane.xlu0 %1697
        %v1699 = vmul.f32 %v1695, %v1505
        %v1700 = vmul.f32 %v1698, %v1505
        %v1701 = vmul.f32 %v1691, %v1691
        %v1702 = vmul.f32 %v1692, %v1692
        %v1703 = vsel %vm459, %v1701, 0.0
        %1704 = vadd.xlane.f32.xlu0 %v1703
        %v1705 = vpop.xlane.xlu0 %1704
        %v1706 = vsel %vm459, %v1702, 0.0
        %1707 = vadd.xlane.f32.xlu0 %v1706
        %v1708 = vpop.xlane.xlu0 %1707
        %v1709 = vmul.f32 %v1705, %v1505
        %v1710 = vmul.f32 %v1708, %v1505
        %v1711 = vmul.f32 %v1699, %v1699
        %v1712 = vmul.f32 %v1700, %v1700
        %v1713 = vsub.f32 %v1709, %v1711
        %v1714 = vsub.f32 %v1710, %v1712
        %v1715 = vsub.f32 %v1691, %v1699
        %v1716 = vsub.f32 %v1692, %v1700
        %v1717 = vadd.f32 %v1713, 1e-05
        %v1718 = vadd.f32 %v1714, 1e-05
        %v1719 = vrsqrt.pop %v1717
        %v1720 = vrsqrt.pop %v1718
        %v1721 = vmul.f32 %v1715, %v1719
        %v1722 = vmul.f32 %v1716, %v1720
        %v1723 = vlaneseq
        %v1724 = vshrl.u32 %v1723, 7
        %v1725 = vsub.s32 6, %v1724
        %v1726 = vrot.slane %v435, %v1725
        %v1727 = vmul.f32 %v1721, %v1726
        %v1728 = vmul.f32 %v1722, %v1726
        %v1729 = vlaneseq
        %v1730 = vshrl.u32 %v1729, 7
        %v1731 = vsub.s32 7, %v1730
        %v1732 = vrot.slane %v435, %v1731
        %v1733 = vadd.f32 %v1727, %v1732
        %v1734 = vadd.f32 %v1728, %v1732
        %1735 = vst.msk [vmem:[#allocation8] sm:$0xff] %vm459, %v1733
        %1736 = vst.msk [vmem:[#allocation8 + $0x8] sm:$0xff] %vm459, %v1734
        // Predicated region
        $region65: #{tpu_custom_call.1} parent=47 // pred_check
          %p1737 = pneg %p233
        $region66: #{tpu_custom_call.1} parent=47 // pred_check_branch
          %1739 = sbr.rel (%p1737) target = $region68
        $region67: #{tpu_custom_call.1} parent=47 // pred_region
          %s1740 = smul.u32 2, %s25
          %s1742 = ssub.s32 256, 256
          %1743 = vsyncadd [#allocation4], %s1742
          %s1744 = smul.addr %s1740, 128
          %s1745 = scalar_lea.hbm %s7, %s1744
          %s1746 = sshll.u32 [#allocation8], 4
          %s1747 = int_to_ptr.vmem [resolvable:$true] %s1746
          %1752 = dma.vmem_to_hbm [thread:$0]  %s1747, 256, %s1745, [#allocation4], 128, 128, 8
        $region68: #{tpu_custom_call.1} parent=47 // pred_fallthru
          _
        // Predicated region
        $region69: #{tpu_custom_call.1} parent=47 // pred_check
          %p1753 = pneg %p233
        $region70: #{tpu_custom_call.1} parent=47 // pred_check_branch
          %1755 = sbr.rel (%p1753) target = $region72
        $region71: #{tpu_custom_call.1} parent=47 // pred_region
          %1756 = dma.done [#allocation4], 256
        $region72: #{tpu_custom_call.1} parent=47 // pred_fallthru
          _
      $region48: #{tpu_custom_call.1} parent=5 // pred_fallthru
        _
      %p1757 = scmp.le.s32.totalorder 2, %s16
      // Predicated region
      $region73: #{tpu_custom_call.1} parent=5 // pred_check
        %p1758 = pneg %p1757
      $region74: #{tpu_custom_call.1} parent=5 // pred_check_branch
        %1760 = sbr.rel (%p1758) target = $region76
      $region75: #{tpu_custom_call.1} parent=5 // pred_region
        %s1761 = ssub.s32 %s16, 2
      $region76: #{tpu_custom_call.1} parent=5 // pred_fallthru
        _
    $region6: #{tpu_custom_call.1} parent=1 // loop_footer
      %s20 = sadd.s32 1, %s16
    $region7: #{tpu_custom_call.1} parent=1 // loop_footer_branch
      %15 = sbr.rel target = $region3
    $region8: #{tpu_custom_call.1} parent=1 // loop_exit
      _
    %1762 = vsyncpa [#allocation3], 1
    %s1763 = scalar_lea.sflag [#allocation3], 1
    %1764 = vsyncpa %s1763, 1
    %1765 = vsyncpa [#allocation6], 1
    %1766 = vsyncpa [#allocation4], 1
    %s1767 = scalar_lea.sflag [#allocation4], 1
    %1768 = vsyncpa %s1767, 1

</llo_original>
